<compile_context>
chip_gen: v7x
topology: tpu7x:2x2x1
jax: 0.10.0
libtpu: 0.0.40
codegen_flags: <defaults>
</compile_context>

<pallas_src>
import functools
import math

import jax
import jax.numpy as jnp
from jax.experimental import pallas as pl
from jax.experimental.pallas import tpu as pltpu


# ---------------------------------------------------------------------------
# Kernel 1: feature transform  XW = X @ W_blockdiag   (row-tiled, W resident)
# ---------------------------------------------------------------------------
def _feat_xform_kernel(x_ref, w_ref, o_ref):
    o_ref[...] = jnp.dot(
        x_ref[...], w_ref[...], preferred_element_type=jnp.float32
    ).astype(o_ref.dtype)


def feature_transform(x, w, *, tm=256):
    """(Npad, Fin) @ (Fin, Hall) -> (Npad, Hall) in bf16, tiled over rows only."""
    npad, fin = x.shape
    hall = w.shape[1]
    assert npad % tm == 0
    return pl.pallas_call(
        _feat_xform_kernel,
        out_shape=jax.ShapeDtypeStruct((npad, hall), jnp.bfloat16),
        grid_spec=pltpu.PrefetchScalarGridSpec(
            num_scalar_prefetch=0,
            grid=(npad // tm,),
            in_specs=[
                pl.BlockSpec((tm, fin), lambda i: (i, 0)),     # X row panel
                pl.BlockSpec((fin, hall), lambda i: (0, 0)),   # full (small) W
            ],
            out_specs=pl.BlockSpec((tm, hall), lambda i: (i, 0)),
        ),
        compiler_params=pltpu.CompilerParams(dimension_semantics=("parallel",)),
    )(x, w)


# ---------------------------------------------------------------------------
# Kernel 2: graph aggregation  out = relu(A @ XW + b)   (tiled + accumulator)
# ---------------------------------------------------------------------------
def _agg_bias_relu_kernel(a_ref, xw_ref, b_ref, o_ref, acc_ref):
    k = pl.program_id(1)

    @pl.when(k == 0)
    def _init():
        acc_ref[...] = jnp.zeros_like(acc_ref)

    # bf16 x bf16 -> f32 accumulation on the MXU
    acc_ref[...] += jnp.dot(
        a_ref[...], xw_ref[...], preferred_element_type=jnp.float32
    )

    @pl.when(k == pl.num_programs(1) - 1)
    def _finalize():
        o_ref[...] = jnp.maximum(acc_ref[...] + b_ref[...], 0.0).astype(o_ref.dtype)


def graph_aggregate_relu(a_bf16, xw_bf16, b, *, tm=256, tk=256):
    """relu(A @ XW + b) with A (Npad, Npad) bf16, XW (Npad, Hall) bf16, b (1, Hall)."""
    npad = a_bf16.shape[0]
    hall = xw_bf16.shape[1]
    assert npad % tm == 0 and npad % tk == 0
    return pl.pallas_call(
        _agg_bias_relu_kernel,
        out_shape=jax.ShapeDtypeStruct((npad, hall), jnp.float32),
        grid_spec=pltpu.PrefetchScalarGridSpec(
            num_scalar_prefetch=0,
            grid=(npad // tm, npad // tk),
            in_specs=[
                pl.BlockSpec((tm, tk), lambda i, k: (i, k)),     # A tile (streamed)
                pl.BlockSpec((tk, hall), lambda i, k: (k, 0)),   # XW k-panel
                pl.BlockSpec((1, hall), lambda i, k: (0, 0)),    # bias (resident)
            ],
            out_specs=pl.BlockSpec((tm, hall), lambda i, k: (i, 0)),
            scratch_shapes=[pltpu.VMEM((tm, hall), jnp.float32)],
        ),
        compiler_params=pltpu.CompilerParams(
            dimension_semantics=("parallel", "arbitrary"),
        ),
    )(a_bf16, xw_bf16, b)


# ---------------------------------------------------------------------------
# Parameters (deterministic init matching the PyTorch module's shapes)
# ---------------------------------------------------------------------------
def _block_diag(mats):
    rows = sum(m.shape[0] for m in mats)
    cols = sum(m.shape[1] for m in mats)
    out = jnp.zeros((rows, cols), mats[0].dtype)
    r = c = 0
    for m in mats:
        out = out.at[r:r + m.shape[0], c:c + m.shape[1]].set(m)
        r += m.shape[0]
        c += m.shape[1]
    return out


def make_encoder_params(key, nfeat, nhid, view_num):
    single_view = nfeat // view_num
    view_feat = [single_view] * (view_num - 1) + [single_view + nfeat % view_num]

    w1, b1 = [], []
    for vf in view_feat:
        key, kw, kb = jax.random.split(key, 3)
        w1.append(jax.random.normal(kw, (vf, nhid), jnp.float32) * 0.1)
        b1.append(jax.random.normal(kb, (1, nhid), jnp.float32) * 0.01)
    key, kw2, kb2 = jax.random.split(key, 3)
    w2 = jax.random.normal(kw2, (nhid, nhid), jnp.float32) * 0.1
    b2 = jax.random.normal(kb2, (1, nhid), jnp.float32) * 0.01

    raw = dict(w1=w1, b1=b1, w2=w2, b2=b2,
               view_feat=view_feat, single_view=single_view)

    # View folding: block-diagonal weights make the per-view GraphConvs a single
    # wide GraphConv (handles the uneven last view exactly, no padding needed).
    folded = dict(
        w1_bd=_block_diag(w1),                       # (nfeat, view_num*nhid)
        b1_all=jnp.concatenate(b1, axis=1),          # (1, view_num*nhid)
        w2_bd=_block_diag([w2] * view_num),          # (view_num*nhid, view_num*nhid)
        b2_all=jnp.tile(b2, (1, view_num)),          # (1, view_num*nhid)
    )
    return raw, folded


# ---------------------------------------------------------------------------
# Encoder forward (eval mode, default concat aggregation)
# ---------------------------------------------------------------------------
@functools.partial(jax.jit, static_argnames=("tm", "tk"))
def encoder_forward(adj, h, params, *, tm=256, tk=256):
    n = adj.shape[0]
    blk = math.lcm(tm, tk)
    npad = -(-n // blk) * blk

    # zero-pad nodes to a tile multiple (exact: padded rows/cols contribute 0
    # through A and are sliced off at the end); adjacency is 0/1 -> bf16 exact.
    a_p = jnp.pad(adj, ((0, npad - n), (0, npad - n))).astype(jnp.bfloat16)
    h_p = jnp.pad(h, ((0, npad - n), (0, 0)))

    # ---- layer 1: all views at once via block-diagonal W1 ----
    xw1 = feature_transform(h_p, params["w1_bd"], tm=tm)                  # bf16
    h1 = graph_aggregate_relu(a_p, xw1, params["b1_all"], tm=tm, tk=tk)   # f32

    # dropout in eval mode is identity (self.training == False)

    # ---- layer 2: shared GraphConv per view via repeated-block-diagonal W2 ----
    xw2 = feature_transform(h1, params["w2_bd"], tm=tm)                   # bf16
    out = graph_aggregate_relu(a_p, xw2, params["b2_all"], tm=tm, tk=tk)  # f32

    # already laid out as concat over views on the feature axis
    return out[:n]


# ---------------------------------------------------------------------------
# Pure-JAX reference (original per-view formulation, f32)
# ---------------------------------------------------------------------------
def encoder_reference(adj, h, raw, view_num):
    sv = raw["single_view"]
    xs = []
    for i in range(view_num):
        if i == view_num - 1:
            xs.append(h[:, i * sv:])
        else:
            xs.append(h[:, i * sv:(i + 1) * sv])
    xs = [jax.nn.relu(adj @ (x @ w) + b)
          for x, w, b in zip(xs, raw["w1"], raw["b1"])]
    xs = [jax.nn.relu(adj @ (x @ raw["w2"]) + raw["b2"]) for x in xs]
    return jnp.concatenate(xs, axis=1)


if __name__ == "__main__":
    key = jax.random.PRNGKey(0)

    # small but representative shapes (uneven last view: 71 = 35 + 36)
    n_nodes, nfeat, nhid, view_num = 384, 71, 64, 2

    k_adj, k_feat, k_param = jax.random.split(key, 3)

    # dense symmetric 0/1 adjacency with self loops (norm='none': no degree norm)
    adj_rand = jax.random.uniform(k_adj, (n_nodes, n_nodes))
    adj = (adj_rand > 0.75).astype(jnp.float32)
    adj = jnp.maximum(adj, adj.T)
    adj = jnp.maximum(adj, jnp.eye(n_nodes, dtype=jnp.float32))

    h = jax.random.normal(k_feat, (n_nodes, nfeat), jnp.float32)

    raw_params, params = make_encoder_params(k_param, nfeat, nhid, view_num)

    out = encoder_forward(adj, h, params)
    out = jax.block_until_ready(out)

    assert out.shape == (n_nodes, view_num * nhid), out.shape
    assert bool(jnp.all(jnp.isfinite(out)))
    assert bool(jnp.all(out >= 0.0))  # ReLU output

    # correctness vs the per-view f32 reference (bf16 matmul inputs -> loose tol)
    ref = encoder_reference(adj, h, raw_params, view_num)
    rel_err = float(jnp.max(jnp.abs(out - ref)) / (jnp.max(jnp.abs(ref)) + 1e-6))
    assert rel_err < 3e-2, f"relative error too high: {rel_err}"

    print("KERNEL_OK")
</pallas_src>

<mosaic_0001>
module attributes {stable_mosaic.version = 11 : i64} {
  func.func @_feat_xform_kernel(%arg0: i32, %arg1: memref<256x71xf32, #tpu.memory_space<vmem>>, %arg2: memref<71x128xf32, #tpu.memory_space<vmem>>, %arg3: memref<256x128xbf16, #tpu.memory_space<vmem>>) attributes {dimension_semantics = [#tpu.dimension_semantics<parallel>], iteration_bounds = array<i64: 2>, scalar_prefetch = 0 : i64, scratch_operands = 0 : i64, tpu.core_type = #tpu.core_type<tc>, window_params = [{transform_indices = @transform_0, window_bounds = array<i64: 256, 71>}, {pipeline_mode = #tpu.pipeline_mode<synchronous>, transform_indices = @transform_1, window_bounds = array<i64: 71, 128>}, {transform_indices = @transform_2, window_bounds = array<i64: 256, 128>}]} {
    %c0 = arith.constant 0 : index
    %c0_0 = arith.constant 0 : index
    %0 = vector.load %arg1[%c0, %c0_0] : memref<256x71xf32, #tpu.memory_space<vmem>>, vector<256x71xf32>
    %c0_1 = arith.constant 0 : index
    %c0_2 = arith.constant 0 : index
    %1 = vector.load %arg2[%c0_1, %c0_2] : memref<71x128xf32, #tpu.memory_space<vmem>>, vector<71x128xf32>
    %cst = arith.constant dense<0.000000e+00> : vector<256x128xf32>
    %2 = tpu.matmul %0, %1, %cst {dimension_numbers = #tpu.dot_dimension_numbers<[1], [0], [0], [1], [0, 0, 1, 1], [], []>} : vector<256x71xf32>, vector<71x128xf32>, vector<256x128xf32> -> vector<256x128xf32>
    %3 = arith.truncf %2 : vector<256x128xf32> to vector<256x128xbf16>
    %c0_3 = arith.constant 0 : index
    %c0_4 = arith.constant 0 : index
    %4 = vector.load %arg3[%c0_3, %c0_4] : memref<256x128xbf16, #tpu.memory_space<vmem>>, vector<256x128xbf16>
    tpu.vector_store %arg3[%c0_3, %c0_4], %3 {strides = array<i32>} : memref<256x128xbf16, #tpu.memory_space<vmem>>, vector<256x128xbf16>,
    return
  }
  func.func @transform_0(%arg0: i32) -> (i32, i32) {
    %c0_i32 = arith.constant 0 : i32
    %c0_i32_0 = arith.constant 0 : i32
    return %arg0, %c0_i32 : i32, i32
  }
  func.func @transform_1(%arg0: i32) -> (i32, i32) {
    %c0_i32 = arith.constant 0 : i32
    %c0_i32_0 = arith.constant 0 : i32
    %c0_i32_1 = arith.constant 0 : i32
    return %c0_i32, %c0_i32_0 : i32, i32
  }
  func.func @transform_2(%arg0: i32) -> (i32, i32) {
    %c0_i32 = arith.constant 0 : i32
    %c0_i32_0 = arith.constant 0 : i32
    return %arg0, %c0_i32 : i32, i32
  }
}

module attributes {stable_mosaic.version = 11 : i64} {
  func.func @_feat_xform_kernel(%arg0: i32, %arg1: memref<256x128xf32, #tpu.memory_space<vmem>>, %arg2: memref<128x128xf32, #tpu.memory_space<vmem>>, %arg3: memref<256x128xbf16, #tpu.memory_space<vmem>>) attributes {dimension_semantics = [#tpu.dimension_semantics<parallel>], iteration_bounds = array<i64: 2>, scalar_prefetch = 0 : i64, scratch_operands = 0 : i64, tpu.core_type = #tpu.core_type<tc>, window_params = [{transform_indices = @transform_0, window_bounds = array<i64: 256, 128>}, {pipeline_mode = #tpu.pipeline_mode<synchronous>, transform_indices = @transform_1, window_bounds = array<i64: 128, 128>}, {transform_indices = @transform_2, window_bounds = array<i64: 256, 128>}]} {
    %c0 = arith.constant 0 : index
    %c0_0 = arith.constant 0 : index
    %0 = vector.load %arg1[%c0, %c0_0] : memref<256x128xf32, #tpu.memory_space<vmem>>, vector<256x128xf32>
    %c0_1 = arith.constant 0 : index
    %c0_2 = arith.constant 0 : index
    %1 = vector.load %arg2[%c0_1, %c0_2] : memref<128x128xf32, #tpu.memory_space<vmem>>, vector<128x128xf32>
    %cst = arith.constant dense<0.000000e+00> : vector<256x128xf32>
    %2 = tpu.matmul %0, %1, %cst {dimension_numbers = #tpu.dot_dimension_numbers<[1], [0], [0], [1], [0, 0, 1, 1], [], []>} : vector<256x128xf32>, vector<128x128xf32>, vector<256x128xf32> -> vector<256x128xf32>
    %3 = arith.truncf %2 : vector<256x128xf32> to vector<256x128xbf16>
    %c0_3 = arith.constant 0 : index
    %c0_4 = arith.constant 0 : index
    %4 = vector.load %arg3[%c0_3, %c0_4] : memref<256x128xbf16, #tpu.memory_space<vmem>>, vector<256x128xbf16>
    tpu.vector_store %arg3[%c0_3, %c0_4], %3 {strides = array<i32>} : memref<256x128xbf16, #tpu.memory_space<vmem>>, vector<256x128xbf16>,
    return
  }
  func.func @transform_0(%arg0: i32) -> (i32, i32) {
    %c0_i32 = arith.constant 0 : i32
    %c0_i32_0 = arith.constant 0 : i32
    return %arg0, %c0_i32 : i32, i32
  }
  func.func @transform_1(%arg0: i32) -> (i32, i32) {
    %c0_i32 = arith.constant 0 : i32
    %c0_i32_0 = arith.constant 0 : i32
    %c0_i32_1 = arith.constant 0 : i32
    return %c0_i32, %c0_i32_0 : i32, i32
  }
  func.func @transform_2(%arg0: i32) -> (i32, i32) {
    %c0_i32 = arith.constant 0 : i32
    %c0_i32_0 = arith.constant 0 : i32
    return %arg0, %c0_i32 : i32, i32
  }
}

module attributes {stable_mosaic.version = 11 : i64} {
  func.func @_agg_bias_relu_kernel(%arg0: i32, %arg1: i32, %arg2: memref<256x256xbf16, #tpu.memory_space<vmem>>, %arg3: memref<256x128xbf16, #tpu.memory_space<vmem>>, %arg4: memref<1x128xf32, #tpu.memory_space<vmem>>, %arg5: memref<256x128xf32, #tpu.memory_space<vmem>>, %arg6: memref<256x128xf32, #tpu.memory_space<vmem>>) attributes {dimension_semantics = [#tpu.dimension_semantics<parallel>, #tpu.dimension_semantics<arbitrary>], iteration_bounds = array<i64: 2, 2>, scalar_prefetch = 0 : i64, scratch_operands = 1 : i64, tpu.core_type = #tpu.core_type<tc>, window_params = [{transform_indices = @transform_0, window_bounds = array<i64: 256, 256>}, {transform_indices = @transform_1, window_bounds = array<i64: 256, 128>}, {pipeline_mode = #tpu.pipeline_mode<synchronous>, transform_indices = @transform_2, window_bounds = array<i64: 1, 128>}, {transform_indices = @transform_3, window_bounds = array<i64: 256, 128>}]} {
    %c0_i32 = arith.constant 0 : i32
    %0 = arith.cmpi eq, %arg1, %c0_i32 : i32
    %1 = arith.extui %0 : i1 to i32
    %c0_i32_0 = arith.constant 0 : i32
    %2 = arith.cmpi ne, %1, %c0_i32_0 : i32
    scf.if %2 {
      %cst_9 = arith.constant 0.000000e+00 : f32
      %12 = vector.broadcast %cst_9 : f32 to vector<256x128xf32>
      %c0_10 = arith.constant 0 : index
      %c0_11 = arith.constant 0 : index
      %13 = vector.load %arg6[%c0_10, %c0_11] : memref<256x128xf32, #tpu.memory_space<vmem>>, vector<256x128xf32>
      tpu.vector_store %arg6[%c0_10, %c0_11], %12 {strides = array<i32>} : memref<256x128xf32, #tpu.memory_space<vmem>>, vector<256x128xf32>,
    } else {
    }
    %c0 = arith.constant 0 : index
    %c0_1 = arith.constant 0 : index
    %3 = vector.load %arg6[%c0, %c0_1] : memref<256x128xf32, #tpu.memory_space<vmem>>, vector<256x128xf32>
    %c0_2 = arith.constant 0 : index
    %c0_3 = arith.constant 0 : index
    %4 = vector.load %arg2[%c0_2, %c0_3] : memref<256x256xbf16, #tpu.memory_space<vmem>>, vector<256x256xbf16>
    %c0_4 = arith.constant 0 : index
    %c0_5 = arith.constant 0 : index
    %5 = vector.load %arg3[%c0_4, %c0_5] : memref<256x128xbf16, #tpu.memory_space<vmem>>, vector<256x128xbf16>
    %cst = arith.constant dense<0.000000e+00> : vector<256x128xf32>
    %6 = tpu.matmul %4, %5, %cst {dimension_numbers = #tpu.dot_dimension_numbers<[1], [0], [0], [1], [0, 0, 1, 1], [], []>} : vector<256x256xbf16>, vector<256x128xbf16>, vector<256x128xf32> -> vector<256x128xf32>
    %7 = arith.addf %3, %6 : vector<256x128xf32>
    %c0_6 = arith.constant 0 : index
    %c0_7 = arith.constant 0 : index
    %8 = vector.load %arg6[%c0_6, %c0_7] : memref<256x128xf32, #tpu.memory_space<vmem>>, vector<256x128xf32>
    tpu.vector_store %arg6[%c0_6, %c0_7], %7 {strides = array<i32>} : memref<256x128xf32, #tpu.memory_space<vmem>>, vector<256x128xf32>,
    %c1_i32 = arith.constant 1 : i32
    %9 = arith.cmpi eq, %arg1, %c1_i32 : i32
    %10 = arith.extui %9 : i1 to i32
    %c0_i32_8 = arith.constant 0 : i32
    %11 = arith.cmpi ne, %10, %c0_i32_8 : i32
    scf.if %11 {
      %c0_9 = arith.constant 0 : index
      %c0_10 = arith.constant 0 : index
      %12 = vector.load %arg6[%c0_9, %c0_10] : memref<256x128xf32, #tpu.memory_space<vmem>>, vector<256x128xf32>
      %c0_11 = arith.constant 0 : index
      %c0_12 = arith.constant 0 : index
      %13 = vector.load %arg4[%c0_11, %c0_12] : memref<1x128xf32, #tpu.memory_space<vmem>>, vector<1x128xf32>
      %14 = vector.broadcast %13 : vector<1x128xf32> to vector<256x128xf32>
      %15 = arith.addf %12, %14 : vector<256x128xf32>
      %cst_13 = arith.constant 0.000000e+00 : f32
      %16 = vector.broadcast %cst_13 : f32 to vector<256x128xf32>
      %17 = arith.maximumf %15, %16 : vector<256x128xf32>
      %c0_14 = arith.constant 0 : index
      %c0_15 = arith.constant 0 : index
      %18 = vector.load %arg5[%c0_14, %c0_15] : memref<256x128xf32, #tpu.memory_space<vmem>>, vector<256x128xf32>
      tpu.vector_store %arg5[%c0_14, %c0_15], %17 {strides = array<i32>} : memref<256x128xf32, #tpu.memory_space<vmem>>, vector<256x128xf32>,
    } else {
    }
    return
  }
  func.func @transform_0(%arg0: i32, %arg1: i32) -> (i32, i32) {
    %c0_i32 = arith.constant 0 : i32
    return %arg0, %arg1 : i32, i32
  }
  func.func @transform_1(%arg0: i32, %arg1: i32) -> (i32, i32) {
    %c0_i32 = arith.constant 0 : i32
    %c0_i32_0 = arith.constant 0 : i32
    return %arg1, %c0_i32 : i32, i32
  }
  func.func @transform_2(%arg0: i32, %arg1: i32) -> (i32, i32) {
    %c0_i32 = arith.constant 0 : i32
    %c0_i32_0 = arith.constant 0 : i32
    %c0_i32_1 = arith.constant 0 : i32
    return %c0_i32, %c0_i32_0 : i32, i32
  }
  func.func @transform_3(%arg0: i32, %arg1: i32) -> (i32, i32) {
    %c0_i32 = arith.constant 0 : i32
    %c0_i32_0 = arith.constant 0 : i32
    return %arg0, %c0_i32 : i32, i32
  }
}

</mosaic_0001>

<llo_original>
// kernel: encoder_forward.6
$region0: #{encoder_forward.6}
  #allocation0 [shape = 'u32[]', space=smem, size = 0x4, offset = 0x4, fixed_abs, tag = 'smem constant byte address 0x4 - core index']
  #allocation1 [shape = 'u32[144,128]{1,0:T(1,128)}', space=vmem, size = 0x12000, scoped, tag = 'internal scratch']
  %s0 = inlined_call_operand.vmem [shape: f32[512,128], index: 0, kind: input, shape index: {}]
  %s1 = inlined_call_operand.vmem [shape: f32[128,128], index: 1, kind: input, shape index: {}]
  %s2 = inlined_call_operand.vmem [shape: bf16[512,128], index: 2, kind: output, shape index: {}]
  %s3 = sld [smem:[#allocation0]]
  $region41: #{encoder_forward.6} parent=0
    _
  %s5 = ssub.s32 1, %s3
  %s6 = scalar_select 0, %s5, %s3
  loop: start=0, step=1, limit=4
  $region2: #{encoder_forward.6} parent=0 // loop_pre_header
    _
  $region3: #{encoder_forward.6} parent=0 // loop_header
    %s8 = sphi 0, %s12
    %p9 = scmp.ge.s32.totalorder %s8, 4
    %s18 = sphi 0, %s20
    %s21 = sphi 0, %s18
    %s22 = sphi 0, %s21
    %s38 = sphi 0, %s22
    %s42 = sphi 0, %s42
    %s44 = sphi 0, %s42
    %s45 = sphi 0, %s44
    %s59 = sphi 0, %s45
    %s65 = sphi 0, %s67
    %s68 = sphi 0, %s65
    %s69 = sphi 0, %s68
    %s85 = sphi 0, %s69
  $region4: #{encoder_forward.6} parent=0 // loop_header_branch
    %11 = sbr.rel (%p9) target = $region8
  $region5: #{encoder_forward.6} parent=0 // loop_body
    %s13 = ssub.s32 %s8, 1
    %s14 = ssub.s32 %s8, 2
    %s15 = sadd.s32 %s8, 1
    %s16 = ssub.s32 %s8, %s15
    %p17 = scmp.eq.s32.totalorder %s16, 0
    %s19 = sadd.s32 %s18, 1
    %s20 = scalar_select %p17, %s18, %s19
    %p23 = pneg %p17
    %p24 = scmp.eq.s32.totalorder %s8, 1
    %p25 = por %p23, %p24
    %p26 = scmp.ne.s32.totalorder %s18, %s21
    %p27 = scmp.eq.s32.totalorder %s8, 0
    %p28 = por %p26, %p27
    %p29 = scmp.ne.s32.totalorder %s18, %s21
    %p30 = scmp.eq.s32.totalorder %s13, 1
    %p31 = por %p29, %p30
    %p32 = scmp.ne.s32.totalorder %s21, %s22
    %p33 = scmp.eq.s32.totalorder %s13, 0
    %p34 = por %p32, %p33
    %p35 = scmp.ne.s32.totalorder %s21, %s22
    %p36 = scmp.eq.s32.totalorder %s14, 1
    %p37 = por %p35, %p36
    %p39 = scmp.ne.s32.totalorder %s22, %s38
    %p40 = scmp.eq.s32.totalorder %s14, 0
    %p41 = por %p39, %p40
    %s43 = sadd.s32 %s42, 1
    %p46 = scmp.eq.s32.totalorder %s8, 1
    %p47 = scmp.ne.s32.totalorder %s42, %s44
    %p48 = scmp.eq.s32.totalorder %s8, 0
    %p49 = por %p47, %p48
    %p50 = scmp.ne.s32.totalorder %s42, %s44
    %p51 = scmp.eq.s32.totalorder %s13, 1
    %p52 = por %p50, %p51
    %p53 = scmp.ne.s32.totalorder %s44, %s45
    %p54 = scmp.eq.s32.totalorder %s13, 0
    %p55 = por %p53, %p54
    %p56 = scmp.ne.s32.totalorder %s44, %s45
    %p57 = scmp.eq.s32.totalorder %s14, 1
    %p58 = por %p56, %p57
    %p60 = scmp.ne.s32.totalorder %s45, %s59
    %p61 = scmp.eq.s32.totalorder %s14, 0
    %p62 = por %p60, %p61
    %s63 = ssub.s32 %s8, %s15
    %p64 = scmp.eq.s32.totalorder %s63, 0
    %s66 = sadd.s32 %s65, 1
    %s67 = scalar_select %p64, %s65, %s66
    %p70 = pneg %p64
    %p71 = scmp.eq.s32.totalorder %s8, 1
    %p72 = por %p70, %p71
    %p73 = scmp.ne.s32.totalorder %s65, %s68
    %p74 = scmp.eq.s32.totalorder %s8, 0
    %p75 = por %p73, %p74
    %p76 = scmp.ne.s32.totalorder %s65, %s68
    %p77 = scmp.eq.s32.totalorder %s13, 1
    %p78 = por %p76, %p77
    %p79 = scmp.ne.s32.totalorder %s68, %s69
    %p80 = scmp.eq.s32.totalorder %s13, 0
    %p81 = por %p79, %p80
    %p82 = scmp.ne.s32.totalorder %s68, %s69
    %p83 = scmp.eq.s32.totalorder %s14, 1
    %p84 = por %p82, %p83
    %p86 = scmp.ne.s32.totalorder %s69, %s85
    %p87 = scmp.eq.s32.totalorder %s14, 0
    %p88 = por %p86, %p87
    %p89 = scmp.le.s32.totalorder 1, %s8
    %p90 = scmp.lt.s32.totalorder %s8, 3
    %p91 = pnand %p89, %p90
    %p92 = pneg %p91
    // Predicated region
    $region9: #{encoder_forward.6} parent=5 // pred_check
      _
    $region10: #{encoder_forward.6} parent=5 // pred_check_branch
      %94 = sbr.rel (%p91) target = $region12
    $region11: #{encoder_forward.6} parent=5 // pred_region
      %s95 = ssub.s32 %s8, 1
      // Predicated region
      $region13: #{encoder_forward.6} parent=11 // pred_check
        %p96 = pneg %p55
      $region14: #{encoder_forward.6} parent=11 // pred_check_branch
        %98 = sbr.rel (%p96) target = $region16
      $region15: #{encoder_forward.6} parent=11 // pred_region
        _
      $region16: #{encoder_forward.6} parent=11 // pred_fallthru
        _
    $region12: #{encoder_forward.6} parent=5 // pred_fallthru
      _
    %p99 = scmp.lt.s32.totalorder %s8, 2
    // Predicated region
    $region17: #{encoder_forward.6} parent=5 // pred_check
      %p100 = pneg %p99
    $region18: #{encoder_forward.6} parent=5 // pred_check_branch
      %102 = sbr.rel (%p100) target = $region20
    $region19: #{encoder_forward.6} parent=5 // pred_region
      // Predicated region
      $region21: #{encoder_forward.6} parent=19 // pred_check
        %p103 = pneg %p28
      $region22: #{encoder_forward.6} parent=19 // pred_check_branch
        %105 = sbr.rel (%p103) target = $region24
      $region23: #{encoder_forward.6} parent=19 // pred_region
        %s106 = smul.u32 32, %s8
        %p107 = scmp.lt.s32.totalorder %s106, 63
        %s108 = scalar_select %p107, %s106, 63
        %s109 = smul.addr %s108, 8
        %s110 = scalar_lea.vmem %s0, %s109
        %s111 = smul.u32 32, %s8
      $region24: #{encoder_forward.6} parent=19 // pred_fallthru
        _
    $region20: #{encoder_forward.6} parent=5 // pred_fallthru
      _
    %p112 = scmp.le.s32.totalorder 1, %s8
    %p113 = scmp.lt.s32.totalorder %s8, 3
    %p114 = pnand %p112, %p113
    %p115 = pneg %p114
    // Predicated region
    $region25: #{encoder_forward.6} parent=5 // pred_check
      _
    $region26: #{encoder_forward.6} parent=5 // pred_check_branch
      %117 = sbr.rel (%p114) target = $region28
    $region27: #{encoder_forward.6} parent=5 // pred_region
      %s118 = ssub.s32 %s8, 1
      %s119 = smul.u32 32, %s13
      %p120 = scmp.lt.s32.totalorder %s119, 63
      %s121 = scalar_select %p120, %s119, 63
      %s122 = smul.addr %s121, 8
      %s123 = scalar_lea.vmem %s0, %s122
      %p124 = pneg %p34
      %p125 = pneg %p31
      %p126 = pneg %p55
      %p127 = pneg %p52
      %p128 = pneg %p81
      %p129 = pneg %p78
      %s130 = smul.u32 32, %s13
      %p131 = scmp.lt.s32.totalorder %s130, 63
      %s132 = scalar_select %p131, %s130, 63
      %s133 = smul.addr %s132, 4
      %s134 = scalar_lea.vmem %s2, %s133
      %s135 = smul.u32 32, %s13
      %p136 = scmp.lt.s32.totalorder %s135, 63
      %s137 = scalar_select %p136, %s135, 63
      %s138 = smul.addr %s137, 8
      %s139 = scalar_lea.vmem %s0, %s138
      %s140 = smul.u32 32, %s13
      %s141 = smul.u32 32, %s13
      %p142 = scmp.lt.s32.totalorder %s141, 63
      %s143 = scalar_select %p142, %s141, 63
      %s144 = smul.addr %s143, 4
      %s145 = scalar_lea.vmem %s2, %s144
      %s146 = smul.u32 32, %s13
      %v147 = vld [vmem:[%s139] sm:$0xff]
      %v148 = vld [vmem:[%s139 + $0x8] sm:$0xff]
      %v149 = vld [vmem:[%s139 + $0x10] sm:$0xff]
      %v150 = vld [vmem:[%s139 + $0x18] sm:$0xff]
      %v151 = vld [vmem:[%s139 + $0x20] sm:$0xff]
      %v152 = vld [vmem:[%s139 + $0x28] sm:$0xff]
      %v153 = vld [vmem:[%s139 + $0x30] sm:$0xff]
      %v154 = vld [vmem:[%s139 + $0x38] sm:$0xff]
      %v155 = vld [vmem:[%s139 + $0x40] sm:$0xff]
      %v156 = vld [vmem:[%s139 + $0x48] sm:$0xff]
      %v157 = vld [vmem:[%s139 + $0x50] sm:$0xff]
      %v158 = vld [vmem:[%s139 + $0x58] sm:$0xff]
      %v159 = vld [vmem:[%s139 + $0x60] sm:$0xff]
      %v160 = vld [vmem:[%s139 + $0x68] sm:$0xff]
      %v161 = vld [vmem:[%s139 + $0x70] sm:$0xff]
      %v162 = vld [vmem:[%s139 + $0x78] sm:$0xff]
      %v163 = vld [vmem:[%s139 + $0x80] sm:$0xff]
      %v164 = vld [vmem:[%s139 + $0x88] sm:$0xff]
      %v165 = vld [vmem:[%s139 + $0x90] sm:$0xff]
      %v166 = vld [vmem:[%s139 + $0x98] sm:$0xff]
      %v167 = vld [vmem:[%s139 + $0xa0] sm:$0xff]
      %v168 = vld [vmem:[%s139 + $0xa8] sm:$0xff]
      %v169 = vld [vmem:[%s139 + $0xb0] sm:$0xff]
      %v170 = vld [vmem:[%s139 + $0xb8] sm:$0xff]
      %v171 = vld [vmem:[%s139 + $0xc0] sm:$0xff]
      %v172 = vld [vmem:[%s139 + $0xc8] sm:$0xff]
      %v173 = vld [vmem:[%s139 + $0xd0] sm:$0xff]
      %v174 = vld [vmem:[%s139 + $0xd8] sm:$0xff]
      %v175 = vld [vmem:[%s139 + $0xe0] sm:$0xff]
      %v176 = vld [vmem:[%s139 + $0xe8] sm:$0xff]
      %v177 = vld [vmem:[%s139 + $0xf0] sm:$0xff]
      %v178 = vld [vmem:[%s139 + $0xf8] sm:$0xff]
      %v179 = vld [vmem:[%s1] sm:$0xff]
      %v180 = vld [vmem:[%s1 + $0x8] sm:$0xff]
      %v181 = vld [vmem:[%s1 + $0x10] sm:$0xff]
      %v182 = vld [vmem:[%s1 + $0x18] sm:$0xff]
      %v183 = vld [vmem:[%s1 + $0x20] sm:$0xff]
      %v184 = vld [vmem:[%s1 + $0x28] sm:$0xff]
      %v185 = vld [vmem:[%s1 + $0x30] sm:$0xff]
      %v186 = vld [vmem:[%s1 + $0x38] sm:$0xff]
      %v187 = vld [vmem:[%s1 + $0x40] sm:$0xff]
      %v188 = vld [vmem:[%s1 + $0x48] sm:$0xff]
      %v189 = vld [vmem:[%s1 + $0x50] sm:$0xff]
      %v190 = vld [vmem:[%s1 + $0x58] sm:$0xff]
      %v191 = vld [vmem:[%s1 + $0x60] sm:$0xff]
      %v192 = vld [vmem:[%s1 + $0x68] sm:$0xff]
      %v193 = vld [vmem:[%s1 + $0x70] sm:$0xff]
      %v194 = vld [vmem:[%s1 + $0x78] sm:$0xff]
      %195 = vmatprep.subr.mxu0 0.0
      %196 = vmatpush1.msra.mxu0 %v179
      %197 = vmatprep.subr.mxu0 0.0
      %198 = vmatpush1.msra.mxu0 %v180
      %199 = vmatprep.subr.mxu0 0.0
      %200 = vmatpush1.msra.mxu0 %v181
      %201 = vmatprep.subr.mxu0 0.0
      %202 = vmatpush1.msra.mxu0 %v182
      %203 = vmatprep.subr.mxu0 0.0
      %204 = vmatpush1.msra.mxu0 %v183
      %205 = vmatprep.subr.mxu0 0.0
      %206 = vmatpush1.msra.mxu0 %v184
      %207 = vmatprep.subr.mxu0 0.0
      %208 = vmatpush1.msra.mxu0 %v185
      %209 = vmatprep.subr.mxu0 0.0
      %210 = vmatpush1.msra.mxu0 %v186
      %211 = vmatprep.subr.mxu0 0.0
      %212 = vmatpush1.msra.mxu0 %v187
      %213 = vmatprep.subr.mxu0 0.0
      %214 = vmatpush1.msra.mxu0 %v188
      %215 = vmatprep.subr.mxu0 0.0
      %216 = vmatpush1.msra.mxu0 %v189
      %217 = vmatprep.subr.mxu0 0.0
      %218 = vmatpush1.msra.mxu0 %v190
      %219 = vmatprep.subr.mxu0 0.0
      %220 = vmatpush1.msra.mxu0 %v191
      %221 = vmatprep.subr.mxu0 0.0
      %222 = vmatpush1.msra.mxu0 %v192
      %223 = vmatprep.subr.mxu0 0.0
      %224 = vmatpush1.msra.mxu0 %v193
      %225 = vmatprep.subr.mxu0 0.0
      %226 = vmatpush1.msra.mxu0 %v194
      %227 = vmatprep.subr.mxu0 0.0
      %228 = vmatpush1.msra.mxu0 0.0
      %229 = vmatprep.subr.mxu0 0.0
      %230 = vmatpush1.msra.mxu0 0.0
      %231 = vmatprep.subr.mxu0 0.0
      %232 = vmatpush1.msra.mxu0 0.0
      %233 = vmatprep.subr.mxu0 0.0
      %234 = vmatpush1.msra.mxu0 0.0
      %235 = vmatprep.subr.mxu0 0.0
      %236 = vmatpush1.msra.mxu0 0.0
      %237 = vmatprep.subr.mxu0 0.0
      %238 = vmatpush1.msra.mxu0 0.0
      %239 = vmatprep.subr.mxu0 0.0
      %240 = vmatpush1.msra.mxu0 0.0
      %241 = vmatprep.subr.mxu0 0.0
      %242 = vmatpush1.msra.mxu0 0.0
      %243 = vmatprep.subr.mxu0 0.0
      %244 = vmatpush1.msra.mxu0 0.0
      %245 = vmatprep.subr.mxu0 0.0
      %246 = vmatpush1.msra.mxu0 0.0
      %247 = vmatprep.subr.mxu0 0.0
      %248 = vmatpush1.msra.mxu0 0.0
      %249 = vmatprep.subr.mxu0 0.0
      %250 = vmatpush1.msra.mxu0 0.0
      %251 = vmatprep.subr.mxu0 0.0
      %252 = vmatpush1.msra.mxu0 0.0
      %253 = vmatprep.subr.mxu0 0.0
      %254 = vmatpush1.msra.mxu0 0.0
      %255 = vmatprep.subr.mxu0 0.0
      %256 = vmatpush1.msra.mxu0 0.0
      %257 = vmatprep.subr.mxu0 0.0
      %258 = vmatpush1.msra.mxu0 0.0
      %259 = vmatprep.mubr.f32.mxu0 0.0
      %260 = vmatmul.mubr.f32.gmra.mrb[0].mxu0 %v147
      %v261 = vpop.f32.mrb[0].mxu0
      %v262 = vadd.f32 0.0, %v261
      %v263 = vpop.f32.mrb[0].mxu0
      %264 = vmatprep.mubr.f32.mxu0 0.0
      %265 = vmatmul.mubr.f32.gmra.mrb[0].mxu0 %v148
      %v266 = vpop.f32.mrb[0].mxu0
      %v267 = vadd.f32 0.0, %v266
      %v268 = vpop.f32.mrb[0].mxu0
      %269 = vmatprep.mubr.f32.mxu0 0.0
      %270 = vmatmul.mubr.f32.gmra.mrb[0].mxu0 %v149
      %v271 = vpop.f32.mrb[0].mxu0
      %v272 = vadd.f32 0.0, %v271
      %v273 = vpop.f32.mrb[0].mxu0
      %274 = vmatprep.mubr.f32.mxu0 0.0
      %275 = vmatmul.mubr.f32.gmra.mrb[0].mxu0 %v150
      %v276 = vpop.f32.mrb[0].mxu0
      %v277 = vadd.f32 0.0, %v276
      %v278 = vpop.f32.mrb[0].mxu0
      %279 = vmatprep.mubr.f32.mxu0 0.0
      %280 = vmatmul.mubr.f32.gmra.mrb[0].mxu0 %v151
      %v281 = vpop.f32.mrb[0].mxu0
      %v282 = vadd.f32 0.0, %v281
      %v283 = vpop.f32.mrb[0].mxu0
      %284 = vmatprep.mubr.f32.mxu0 0.0
      %285 = vmatmul.mubr.f32.gmra.mrb[0].mxu0 %v152
      %v286 = vpop.f32.mrb[0].mxu0
      %v287 = vadd.f32 0.0, %v286
      %v288 = vpop.f32.mrb[0].mxu0
      %289 = vmatprep.mubr.f32.mxu0 0.0
      %290 = vmatmul.mubr.f32.gmra.mrb[0].mxu0 %v153
      %v291 = vpop.f32.mrb[0].mxu0
      %v292 = vadd.f32 0.0, %v291
      %v293 = vpop.f32.mrb[0].mxu0
      %294 = vmatprep.mubr.f32.mxu0 0.0
      %295 = vmatmul.mubr.f32.gmra.mrb[0].mxu0 %v154
      %v296 = vpop.f32.mrb[0].mxu0
      %v297 = vadd.f32 0.0, %v296
      %v298 = vpop.f32.mrb[0].mxu0
      %299 = vmatprep.mubr.f32.mxu0 0.0
      %300 = vmatmul.mubr.f32.gmra.mrb[0].mxu0 %v155
      %v301 = vpop.f32.mrb[0].mxu0
      %v302 = vadd.f32 0.0, %v301
      %v303 = vpop.f32.mrb[0].mxu0
      %304 = vmatprep.mubr.f32.mxu0 0.0
      %305 = vmatmul.mubr.f32.gmra.mrb[0].mxu0 %v156
      %v306 = vpop.f32.mrb[0].mxu0
      %v307 = vadd.f32 0.0, %v306
      %v308 = vpop.f32.mrb[0].mxu0
      %309 = vmatprep.mubr.f32.mxu0 0.0
      %310 = vmatmul.mubr.f32.gmra.mrb[0].mxu0 %v157
      %v311 = vpop.f32.mrb[0].mxu0
      %v312 = vadd.f32 0.0, %v311
      %v313 = vpop.f32.mrb[0].mxu0
      %314 = vmatprep.mubr.f32.mxu0 0.0
      %315 = vmatmul.mubr.f32.gmra.mrb[0].mxu0 %v158
      %v316 = vpop.f32.mrb[0].mxu0
      %v317 = vadd.f32 0.0, %v316
      %v318 = vpop.f32.mrb[0].mxu0
      %319 = vmatprep.mubr.f32.mxu0 0.0
      %320 = vmatmul.mubr.f32.gmra.mrb[0].mxu0 %v159
      %v321 = vpop.f32.mrb[0].mxu0
      %v322 = vadd.f32 0.0, %v321
      %v323 = vpop.f32.mrb[0].mxu0
      %324 = vmatprep.mubr.f32.mxu0 0.0
      %325 = vmatmul.mubr.f32.gmra.mrb[0].mxu0 %v160
      %v326 = vpop.f32.mrb[0].mxu0
      %v327 = vadd.f32 0.0, %v326
      %v328 = vpop.f32.mrb[0].mxu0
      %329 = vmatprep.mubr.f32.mxu0 0.0
      %330 = vmatmul.mubr.f32.gmra.mrb[0].mxu0 %v161
      %v331 = vpop.f32.mrb[0].mxu0
      %v332 = vadd.f32 0.0, %v331
      %v333 = vpop.f32.mrb[0].mxu0
      %334 = vmatprep.mubr.f32.mxu0 0.0
      %335 = vmatmul.mubr.f32.gmra.mrb[0].mxu0 %v162
      %v336 = vpop.f32.mrb[0].mxu0
      %v337 = vadd.f32 0.0, %v336
      %v338 = vpop.f32.mrb[0].mxu0
      %339 = vmatprep.mubr.f32.mxu0 0.0
      %340 = vmatmul.mubr.f32.gmra.mrb[0].mxu0 %v163
      %v341 = vpop.f32.mrb[0].mxu0
      %v342 = vadd.f32 0.0, %v341
      %v343 = vpop.f32.mrb[0].mxu0
      %344 = vmatprep.mubr.f32.mxu0 0.0
      %345 = vmatmul.mubr.f32.gmra.mrb[0].mxu0 %v164
      %v346 = vpop.f32.mrb[0].mxu0
      %v347 = vadd.f32 0.0, %v346
      %v348 = vpop.f32.mrb[0].mxu0
      %349 = vmatprep.mubr.f32.mxu0 0.0
      %350 = vmatmul.mubr.f32.gmra.mrb[0].mxu0 %v165
      %v351 = vpop.f32.mrb[0].mxu0
      %v352 = vadd.f32 0.0, %v351
      %v353 = vpop.f32.mrb[0].mxu0
      %354 = vmatprep.mubr.f32.mxu0 0.0
      %355 = vmatmul.mubr.f32.gmra.mrb[0].mxu0 %v166
      %v356 = vpop.f32.mrb[0].mxu0
      %v357 = vadd.f32 0.0, %v356
      %v358 = vpop.f32.mrb[0].mxu0
      %359 = vmatprep.mubr.f32.mxu0 0.0
      %360 = vmatmul.mubr.f32.gmra.mrb[0].mxu0 %v167
      %v361 = vpop.f32.mrb[0].mxu0
      %v362 = vadd.f32 0.0, %v361
      %v363 = vpop.f32.mrb[0].mxu0
      %364 = vmatprep.mubr.f32.mxu0 0.0
      %365 = vmatmul.mubr.f32.gmra.mrb[0].mxu0 %v168
      %v366 = vpop.f32.mrb[0].mxu0
      %v367 = vadd.f32 0.0, %v366
      %v368 = vpop.f32.mrb[0].mxu0
      %369 = vmatprep.mubr.f32.mxu0 0.0
      %370 = vmatmul.mubr.f32.gmra.mrb[0].mxu0 %v169
      %v371 = vpop.f32.mrb[0].mxu0
      %v372 = vadd.f32 0.0, %v371
      %v373 = vpop.f32.mrb[0].mxu0
      %374 = vmatprep.mubr.f32.mxu0 0.0
      %375 = vmatmul.mubr.f32.gmra.mrb[0].mxu0 %v170
      %v376 = vpop.f32.mrb[0].mxu0
      %v377 = vadd.f32 0.0, %v376
      %v378 = vpop.f32.mrb[0].mxu0
      %379 = vmatprep.mubr.f32.mxu0 0.0
      %380 = vmatmul.mubr.f32.gmra.mrb[0].mxu0 %v171
      %v381 = vpop.f32.mrb[0].mxu0
      %v382 = vadd.f32 0.0, %v381
      %v383 = vpop.f32.mrb[0].mxu0
      %384 = vmatprep.mubr.f32.mxu0 0.0
      %385 = vmatmul.mubr.f32.gmra.mrb[0].mxu0 %v172
      %v386 = vpop.f32.mrb[0].mxu0
      %v387 = vadd.f32 0.0, %v386
      %v388 = vpop.f32.mrb[0].mxu0
      %389 = vmatprep.mubr.f32.mxu0 0.0
      %390 = vmatmul.mubr.f32.gmra.mrb[0].mxu0 %v173
      %v391 = vpop.f32.mrb[0].mxu0
      %v392 = vadd.f32 0.0, %v391
      %v393 = vpop.f32.mrb[0].mxu0
      %394 = vmatprep.mubr.f32.mxu0 0.0
      %395 = vmatmul.mubr.f32.gmra.mrb[0].mxu0 %v174
      %v396 = vpop.f32.mrb[0].mxu0
      %v397 = vadd.f32 0.0, %v396
      %v398 = vpop.f32.mrb[0].mxu0
      %399 = vmatprep.mubr.f32.mxu0 0.0
      %400 = vmatmul.mubr.f32.gmra.mrb[0].mxu0 %v175
      %v401 = vpop.f32.mrb[0].mxu0
      %v402 = vadd.f32 0.0, %v401
      %v403 = vpop.f32.mrb[0].mxu0
      %404 = vmatprep.mubr.f32.mxu0 0.0
      %405 = vmatmul.mubr.f32.gmra.mrb[0].mxu0 %v176
      %v406 = vpop.f32.mrb[0].mxu0
      %v407 = vadd.f32 0.0, %v406
      %v408 = vpop.f32.mrb[0].mxu0
      %409 = vmatprep.mubr.f32.mxu0 0.0
      %410 = vmatmul.mubr.f32.gmra.mrb[0].mxu0 %v177
      %v411 = vpop.f32.mrb[0].mxu0
      %v412 = vadd.f32 0.0, %v411
      %v413 = vpop.f32.mrb[0].mxu0
      %414 = vmatprep.mubr.f32.mxu0 0.0
      %415 = vmatmul.mubr.f32.gmra.mrb[0].mxu0 %v178
      %v416 = vpop.f32.mrb[0].mxu0
      %v417 = vadd.f32 0.0, %v416
      %v418 = vpop.f32.mrb[0].mxu0
      %419 = vdwg.mxu0
      %v420 = vpack.c.bf16 %v267, %v262
      %v421 = vpack.c.bf16 %v277, %v272
      %v422 = vpack.c.bf16 %v287, %v282
      %v423 = vpack.c.bf16 %v297, %v292
      %v424 = vpack.c.bf16 %v307, %v302
      %v425 = vpack.c.bf16 %v317, %v312
      %v426 = vpack.c.bf16 %v327, %v322
      %v427 = vpack.c.bf16 %v337, %v332
      %v428 = vpack.c.bf16 %v347, %v342
      %v429 = vpack.c.bf16 %v357, %v352
      %v430 = vpack.c.bf16 %v367, %v362
      %v431 = vpack.c.bf16 %v377, %v372
      %v432 = vpack.c.bf16 %v387, %v382
      %v433 = vpack.c.bf16 %v397, %v392
      %v434 = vpack.c.bf16 %v407, %v402
      %v435 = vpack.c.bf16 %v417, %v412
      %v452 = vunpack.c.l.b16 %v420
      %v453 = vunpack.c.h.b16 %v420
      %v454 = vunpack.c.l.b16 %v421
      %v455 = vunpack.c.h.b16 %v421
      %v456 = vunpack.c.l.b16 %v422
      %v457 = vunpack.c.h.b16 %v422
      %v458 = vunpack.c.l.b16 %v423
      %v459 = vunpack.c.h.b16 %v423
      %v460 = vunpack.c.l.b16 %v424
      %v461 = vunpack.c.h.b16 %v424
      %v462 = vunpack.c.l.b16 %v425
      %v463 = vunpack.c.h.b16 %v425
      %v464 = vunpack.c.l.b16 %v426
      %v465 = vunpack.c.h.b16 %v426
      %v466 = vunpack.c.l.b16 %v427
      %v467 = vunpack.c.h.b16 %v427
      %v468 = vunpack.c.l.b16 %v428
      %v469 = vunpack.c.h.b16 %v428
      %v470 = vunpack.c.l.b16 %v429
      %v471 = vunpack.c.h.b16 %v429
      %v472 = vunpack.c.l.b16 %v430
      %v473 = vunpack.c.h.b16 %v430
      %v474 = vunpack.c.l.b16 %v431
      %v475 = vunpack.c.h.b16 %v431
      %v476 = vunpack.c.l.b16 %v432
      %v477 = vunpack.c.h.b16 %v432
      %v478 = vunpack.c.l.b16 %v433
      %v479 = vunpack.c.h.b16 %v433
      %v480 = vunpack.c.l.b16 %v434
      %v481 = vunpack.c.h.b16 %v434
      %v482 = vunpack.c.l.b16 %v435
      %v483 = vunpack.c.h.b16 %v435
      %v484 = vpack.c.b16 %v452, %v452
      %v485 = vpack.c.b16 %v453, %v453
      %v486 = vpack.c.b16 %v454, %v454
      %v487 = vpack.c.b16 %v455, %v455
      %v488 = vpack.c.b16 %v456, %v456
      %v489 = vpack.c.b16 %v457, %v457
      %v490 = vpack.c.b16 %v458, %v458
      %v491 = vpack.c.b16 %v459, %v459
      %v492 = vpack.c.b16 %v460, %v460
      %v493 = vpack.c.b16 %v461, %v461
      %v494 = vpack.c.b16 %v462, %v462
      %v495 = vpack.c.b16 %v463, %v463
      %v496 = vpack.c.b16 %v464, %v464
      %v497 = vpack.c.b16 %v465, %v465
      %v498 = vpack.c.b16 %v466, %v466
      %v499 = vpack.c.b16 %v467, %v467
      %v500 = vpack.c.b16 %v468, %v468
      %v501 = vpack.c.b16 %v469, %v469
      %v502 = vpack.c.b16 %v470, %v470
      %v503 = vpack.c.b16 %v471, %v471
      %v504 = vpack.c.b16 %v472, %v472
      %v505 = vpack.c.b16 %v473, %v473
      %v506 = vpack.c.b16 %v474, %v474
      %v507 = vpack.c.b16 %v475, %v475
      %v508 = vpack.c.b16 %v476, %v476
      %v509 = vpack.c.b16 %v477, %v477
      %v510 = vpack.c.b16 %v478, %v478
      %v511 = vpack.c.b16 %v479, %v479
      %v512 = vpack.c.b16 %v480, %v480
      %v513 = vpack.c.b16 %v481, %v481
      %v514 = vpack.c.b16 %v482, %v482
      %v515 = vpack.c.b16 %v483, %v483
      %548 = vst [vmem:[%s145] sm:$0xf] %v484
      %549 = vst [vmem:[%s145 + $0x4] sm:$0xf] %v485
      %550 = vst [vmem:[%s145 + $0x8] sm:$0xf] %v486
      %551 = vst [vmem:[%s145 + $0xc] sm:$0xf] %v487
      %552 = vst [vmem:[%s145 + $0x10] sm:$0xf] %v488
      %553 = vst [vmem:[%s145 + $0x14] sm:$0xf] %v489
      %554 = vst [vmem:[%s145 + $0x18] sm:$0xf] %v490
      %555 = vst [vmem:[%s145 + $0x1c] sm:$0xf] %v491
      %556 = vst [vmem:[%s145 + $0x20] sm:$0xf] %v492
      %557 = vst [vmem:[%s145 + $0x24] sm:$0xf] %v493
      %558 = vst [vmem:[%s145 + $0x28] sm:$0xf] %v494
      %559 = vst [vmem:[%s145 + $0x2c] sm:$0xf] %v495
      %560 = vst [vmem:[%s145 + $0x30] sm:$0xf] %v496
      %561 = vst [vmem:[%s145 + $0x34] sm:$0xf] %v497
      %562 = vst [vmem:[%s145 + $0x38] sm:$0xf] %v498
      %563 = vst [vmem:[%s145 + $0x3c] sm:$0xf] %v499
      %564 = vst [vmem:[%s145 + $0x40] sm:$0xf] %v500
      %565 = vst [vmem:[%s145 + $0x44] sm:$0xf] %v501
      %566 = vst [vmem:[%s145 + $0x48] sm:$0xf] %v502
      %567 = vst [vmem:[%s145 + $0x4c] sm:$0xf] %v503
      %568 = vst [vmem:[%s145 + $0x50] sm:$0xf] %v504
      %569 = vst [vmem:[%s145 + $0x54] sm:$0xf] %v505
      %570 = vst [vmem:[%s145 + $0x58] sm:$0xf] %v506
      %571 = vst [vmem:[%s145 + $0x5c] sm:$0xf] %v507
      %572 = vst [vmem:[%s145 + $0x60] sm:$0xf] %v508
      %573 = vst [vmem:[%s145 + $0x64] sm:$0xf] %v509
      %574 = vst [vmem:[%s145 + $0x68] sm:$0xf] %v510
      %575 = vst [vmem:[%s145 + $0x6c] sm:$0xf] %v511
      %576 = vst [vmem:[%s145 + $0x70] sm:$0xf] %v512
      %577 = vst [vmem:[%s145 + $0x74] sm:$0xf] %v513
      %578 = vst [vmem:[%s145 + $0x78] sm:$0xf] %v514
      %579 = vst [vmem:[%s145 + $0x7c] sm:$0xf] %v515
      %s580 = smul.u32 32, %s13
      %p581 = scmp.lt.s32.totalorder %s580, 63
      %s582 = scalar_select %p581, %s580, 63
      %s583 = smul.addr %s582, 4
      %s584 = scalar_lea.vmem %s2, %s583
      // Predicated region
      $region29: #{encoder_forward.6} parent=27 // pred_check
        %p585 = pneg %p78
      $region30: #{encoder_forward.6} parent=27 // pred_check_branch
        %587 = sbr.rel (%p585) target = $region32
      $region31: #{encoder_forward.6} parent=27 // pred_region
        %s588 = smul.u32 32, %s13
      $region32: #{encoder_forward.6} parent=27 // pred_fallthru
        _
    $region28: #{encoder_forward.6} parent=5 // pred_fallthru
      _
    %p589 = scmp.le.s32.totalorder 2, %s8
    // Predicated region
    $region33: #{encoder_forward.6} parent=5 // pred_check
      %p590 = pneg %p589
    $region34: #{encoder_forward.6} parent=5 // pred_check_branch
      %592 = sbr.rel (%p590) target = $region36
    $region35: #{encoder_forward.6} parent=5 // pred_region
      %s593 = ssub.s32 %s8, 2
      // Predicated region
      $region37: #{encoder_forward.6} parent=35 // pred_check
        %p594 = pneg %p84
      $region38: #{encoder_forward.6} parent=35 // pred_check_branch
        %596 = sbr.rel (%p594) target = $region40
      $region39: #{encoder_forward.6} parent=35 // pred_region
        %s597 = smul.u32 32, %s14
        %p598 = scmp.lt.s32.totalorder %s597, 63
        %s599 = scalar_select %p598, %s597, 63
        %s600 = smul.addr %s599, 4
        %s601 = scalar_lea.vmem %s2, %s600
      $region40: #{encoder_forward.6} parent=35 // pred_fallthru
        _
    $region36: #{encoder_forward.6} parent=5 // pred_fallthru
      _
  $region6: #{encoder_forward.6} parent=0 // loop_footer
    %s12 = sadd.s32 1, %s8
  $region7: #{encoder_forward.6} parent=0 // loop_footer_branch
    %7 = sbr.rel target = $region3
  $region8: #{encoder_forward.6} parent=0 // loop_exit
    _

// kernel: encoder_forward.4
$region0: #{encoder_forward.4}
  #allocation0 [shape = 'u32[]', space=smem, size = 0x4, offset = 0x4, fixed_abs, tag = 'smem constant byte address 0x4 - core index']
  #allocation1 [shape = 'u32[144,128]{1,0:T(1,128)}', space=vmem, size = 0x12000, scoped, tag = 'internal scratch']
  %s0 = inlined_call_operand.vmem [shape: f32[512,71], index: 0, kind: input, shape index: {}]
  %s1 = inlined_call_operand.vmem [shape: f32[71,128], index: 1, kind: input, shape index: {}]
  %s2 = inlined_call_operand.vmem [shape: bf16[512,128], index: 2, kind: output, shape index: {}]
  %s3 = sld [smem:[#allocation0]]
  $region41: #{encoder_forward.4} parent=0
    _
  %s5 = ssub.s32 1, %s3
  %s6 = scalar_select 0, %s5, %s3
  loop: start=0, step=1, limit=4
  $region2: #{encoder_forward.4} parent=0 // loop_pre_header
    _
  $region3: #{encoder_forward.4} parent=0 // loop_header
    %s8 = sphi 0, %s12
    %p9 = scmp.ge.s32.totalorder %s8, 4
    %s18 = sphi 0, %s20
    %s21 = sphi 0, %s18
    %s22 = sphi 0, %s21
    %s38 = sphi 0, %s22
    %s42 = sphi 0, %s42
    %s44 = sphi 0, %s42
    %s45 = sphi 0, %s44
    %s59 = sphi 0, %s45
    %s65 = sphi 0, %s67
    %s68 = sphi 0, %s65
    %s69 = sphi 0, %s68
    %s85 = sphi 0, %s69
  $region4: #{encoder_forward.4} parent=0 // loop_header_branch
    %11 = sbr.rel (%p9) target = $region8
  $region5: #{encoder_forward.4} parent=0 // loop_body
    %s13 = ssub.s32 %s8, 1
    %s14 = ssub.s32 %s8, 2
    %s15 = sadd.s32 %s8, 1
    %s16 = ssub.s32 %s8, %s15
    %p17 = scmp.eq.s32.totalorder %s16, 0
    %s19 = sadd.s32 %s18, 1
    %s20 = scalar_select %p17, %s18, %s19
    %p23 = pneg %p17
    %p24 = scmp.eq.s32.totalorder %s8, 1
    %p25 = por %p23, %p24
    %p26 = scmp.ne.s32.totalorder %s18, %s21
    %p27 = scmp.eq.s32.totalorder %s8, 0
    %p28 = por %p26, %p27
    %p29 = scmp.ne.s32.totalorder %s18, %s21
    %p30 = scmp.eq.s32.totalorder %s13, 1
    %p31 = por %p29, %p30
    %p32 = scmp.ne.s32.totalorder %s21, %s22
    %p33 = scmp.eq.s32.totalorder %s13, 0
    %p34 = por %p32, %p33
    %p35 = scmp.ne.s32.totalorder %s21, %s22
    %p36 = scmp.eq.s32.totalorder %s14, 1
    %p37 = por %p35, %p36
    %p39 = scmp.ne.s32.totalorder %s22, %s38
    %p40 = scmp.eq.s32.totalorder %s14, 0
    %p41 = por %p39, %p40
    %s43 = sadd.s32 %s42, 1
    %p46 = scmp.eq.s32.totalorder %s8, 1
    %p47 = scmp.ne.s32.totalorder %s42, %s44
    %p48 = scmp.eq.s32.totalorder %s8, 0
    %p49 = por %p47, %p48
    %p50 = scmp.ne.s32.totalorder %s42, %s44
    %p51 = scmp.eq.s32.totalorder %s13, 1
    %p52 = por %p50, %p51
    %p53 = scmp.ne.s32.totalorder %s44, %s45
    %p54 = scmp.eq.s32.totalorder %s13, 0
    %p55 = por %p53, %p54
    %p56 = scmp.ne.s32.totalorder %s44, %s45
    %p57 = scmp.eq.s32.totalorder %s14, 1
    %p58 = por %p56, %p57
    %p60 = scmp.ne.s32.totalorder %s45, %s59
    %p61 = scmp.eq.s32.totalorder %s14, 0
    %p62 = por %p60, %p61
    %s63 = ssub.s32 %s8, %s15
    %p64 = scmp.eq.s32.totalorder %s63, 0
    %s66 = sadd.s32 %s65, 1
    %s67 = scalar_select %p64, %s65, %s66
    %p70 = pneg %p64
    %p71 = scmp.eq.s32.totalorder %s8, 1
    %p72 = por %p70, %p71
    %p73 = scmp.ne.s32.totalorder %s65, %s68
    %p74 = scmp.eq.s32.totalorder %s8, 0
    %p75 = por %p73, %p74
    %p76 = scmp.ne.s32.totalorder %s65, %s68
    %p77 = scmp.eq.s32.totalorder %s13, 1
    %p78 = por %p76, %p77
    %p79 = scmp.ne.s32.totalorder %s68, %s69
    %p80 = scmp.eq.s32.totalorder %s13, 0
    %p81 = por %p79, %p80
    %p82 = scmp.ne.s32.totalorder %s68, %s69
    %p83 = scmp.eq.s32.totalorder %s14, 1
    %p84 = por %p82, %p83
    %p86 = scmp.ne.s32.totalorder %s69, %s85
    %p87 = scmp.eq.s32.totalorder %s14, 0
    %p88 = por %p86, %p87
    %p89 = scmp.le.s32.totalorder 1, %s8
    %p90 = scmp.lt.s32.totalorder %s8, 3
    %p91 = pnand %p89, %p90
    %p92 = pneg %p91
    // Predicated region
    $region9: #{encoder_forward.4} parent=5 // pred_check
      _
    $region10: #{encoder_forward.4} parent=5 // pred_check_branch
      %94 = sbr.rel (%p91) target = $region12
    $region11: #{encoder_forward.4} parent=5 // pred_region
      %s95 = ssub.s32 %s8, 1
      // Predicated region
      $region13: #{encoder_forward.4} parent=11 // pred_check
        %p96 = pneg %p55
      $region14: #{encoder_forward.4} parent=11 // pred_check_branch
        %98 = sbr.rel (%p96) target = $region16
      $region15: #{encoder_forward.4} parent=11 // pred_region
        _
      $region16: #{encoder_forward.4} parent=11 // pred_fallthru
        _
    $region12: #{encoder_forward.4} parent=5 // pred_fallthru
      _
    %p99 = scmp.lt.s32.totalorder %s8, 2
    // Predicated region
    $region17: #{encoder_forward.4} parent=5 // pred_check
      %p100 = pneg %p99
    $region18: #{encoder_forward.4} parent=5 // pred_check_branch
      %102 = sbr.rel (%p100) target = $region20
    $region19: #{encoder_forward.4} parent=5 // pred_region
      // Predicated region
      $region21: #{encoder_forward.4} parent=19 // pred_check
        %p103 = pneg %p28
      $region22: #{encoder_forward.4} parent=19 // pred_check_branch
        %105 = sbr.rel (%p103) target = $region24
      $region23: #{encoder_forward.4} parent=19 // pred_region
        %s106 = smul.u32 32, %s8
        %p107 = scmp.lt.s32.totalorder %s106, 63
        %s108 = scalar_select %p107, %s106, 63
        %s109 = smul.addr %s108, 8
        %s110 = scalar_lea.vmem %s0, %s109
        %s111 = smul.u32 32, %s8
      $region24: #{encoder_forward.4} parent=19 // pred_fallthru
        _
    $region20: #{encoder_forward.4} parent=5 // pred_fallthru
      _
    %p112 = scmp.le.s32.totalorder 1, %s8
    %p113 = scmp.lt.s32.totalorder %s8, 3
    %p114 = pnand %p112, %p113
    %p115 = pneg %p114
    // Predicated region
    $region25: #{encoder_forward.4} parent=5 // pred_check
      _
    $region26: #{encoder_forward.4} parent=5 // pred_check_branch
      %117 = sbr.rel (%p114) target = $region28
    $region27: #{encoder_forward.4} parent=5 // pred_region
      %s118 = ssub.s32 %s8, 1
      %s119 = smul.u32 32, %s13
      %p120 = scmp.lt.s32.totalorder %s119, 63
      %s121 = scalar_select %p120, %s119, 63
      %s122 = smul.addr %s121, 8
      %s123 = scalar_lea.vmem %s0, %s122
      %p124 = pneg %p34
      %p125 = pneg %p31
      %p126 = pneg %p55
      %p127 = pneg %p52
      %p128 = pneg %p81
      %p129 = pneg %p78
      %s130 = smul.u32 32, %s13
      %p131 = scmp.lt.s32.totalorder %s130, 63
      %s132 = scalar_select %p131, %s130, 63
      %s133 = smul.addr %s132, 4
      %s134 = scalar_lea.vmem %s2, %s133
      %s135 = smul.u32 32, %s13
      %p136 = scmp.lt.s32.totalorder %s135, 63
      %s137 = scalar_select %p136, %s135, 63
      %s138 = smul.addr %s137, 8
      %s139 = scalar_lea.vmem %s0, %s138
      %s140 = smul.u32 32, %s13
      %s141 = smul.u32 32, %s13
      %p142 = scmp.lt.s32.totalorder %s141, 63
      %s143 = scalar_select %p142, %s141, 63
      %s144 = smul.addr %s143, 4
      %s145 = scalar_lea.vmem %s2, %s144
      %s146 = smul.u32 32, %s13
      %v147 = vld [vmem:[%s139] sm:$0xff]
      %v148 = vld [vmem:[%s139 + $0x8] sm:$0xff]
      %v149 = vld [vmem:[%s139 + $0x10] sm:$0xff]
      %v150 = vld [vmem:[%s139 + $0x18] sm:$0xff]
      %v151 = vld [vmem:[%s139 + $0x20] sm:$0xff]
      %v152 = vld [vmem:[%s139 + $0x28] sm:$0xff]
      %v153 = vld [vmem:[%s139 + $0x30] sm:$0xff]
      %v154 = vld [vmem:[%s139 + $0x38] sm:$0xff]
      %v155 = vld [vmem:[%s139 + $0x40] sm:$0xff]
      %v156 = vld [vmem:[%s139 + $0x48] sm:$0xff]
      %v157 = vld [vmem:[%s139 + $0x50] sm:$0xff]
      %v158 = vld [vmem:[%s139 + $0x58] sm:$0xff]
      %v159 = vld [vmem:[%s139 + $0x60] sm:$0xff]
      %v160 = vld [vmem:[%s139 + $0x68] sm:$0xff]
      %v161 = vld [vmem:[%s139 + $0x70] sm:$0xff]
      %v162 = vld [vmem:[%s139 + $0x78] sm:$0xff]
      %v163 = vld [vmem:[%s139 + $0x80] sm:$0xff]
      %v164 = vld [vmem:[%s139 + $0x88] sm:$0xff]
      %v165 = vld [vmem:[%s139 + $0x90] sm:$0xff]
      %v166 = vld [vmem:[%s139 + $0x98] sm:$0xff]
      %v167 = vld [vmem:[%s139 + $0xa0] sm:$0xff]
      %v168 = vld [vmem:[%s139 + $0xa8] sm:$0xff]
      %v169 = vld [vmem:[%s139 + $0xb0] sm:$0xff]
      %v170 = vld [vmem:[%s139 + $0xb8] sm:$0xff]
      %v171 = vld [vmem:[%s139 + $0xc0] sm:$0xff]
      %v172 = vld [vmem:[%s139 + $0xc8] sm:$0xff]
      %v173 = vld [vmem:[%s139 + $0xd0] sm:$0xff]
      %v174 = vld [vmem:[%s139 + $0xd8] sm:$0xff]
      %v175 = vld [vmem:[%s139 + $0xe0] sm:$0xff]
      %v176 = vld [vmem:[%s139 + $0xe8] sm:$0xff]
      %v177 = vld [vmem:[%s139 + $0xf0] sm:$0xff]
      %v178 = vld [vmem:[%s139 + $0xf8] sm:$0xff]
      %v179 = vld [vmem:[%s1] sm:$0xff]
      %v180 = vld [vmem:[%s1 + $0x8] sm:$0xff]
      %v181 = vld [vmem:[%s1 + $0x10] sm:$0xff]
      %v182 = vld [vmem:[%s1 + $0x18] sm:$0xff]
      %v183 = vld [vmem:[%s1 + $0x20] sm:$0xff]
      %v184 = vld [vmem:[%s1 + $0x28] sm:$0xff]
      %v185 = vld [vmem:[%s1 + $0x30] sm:$0xff]
      %v186 = vld [vmem:[%s1 + $0x38] sm:$0xff]
      %v187 = vld [vmem:[%s1 + $0x40] sm:$0x7f]
      %vm188 = vcmask 580608
      %v190 = vsel %vm188, %v147, 0
      %v193 = vsel %vm188, %v148, 0
      %v196 = vsel %vm188, %v149, 0
      %v199 = vsel %vm188, %v150, 0
      %v202 = vsel %vm188, %v151, 0
      %v205 = vsel %vm188, %v152, 0
      %v208 = vsel %vm188, %v153, 0
      %v211 = vsel %vm188, %v154, 0
      %v214 = vsel %vm188, %v155, 0
      %v217 = vsel %vm188, %v156, 0
      %v220 = vsel %vm188, %v157, 0
      %v223 = vsel %vm188, %v158, 0
      %v226 = vsel %vm188, %v159, 0
      %v229 = vsel %vm188, %v160, 0
      %v232 = vsel %vm188, %v161, 0
      %v235 = vsel %vm188, %v162, 0
      %v238 = vsel %vm188, %v163, 0
      %v241 = vsel %vm188, %v164, 0
      %v244 = vsel %vm188, %v165, 0
      %v247 = vsel %vm188, %v166, 0
      %v250 = vsel %vm188, %v167, 0
      %v253 = vsel %vm188, %v168, 0
      %v256 = vsel %vm188, %v169, 0
      %v259 = vsel %vm188, %v170, 0
      %v262 = vsel %vm188, %v171, 0
      %v265 = vsel %vm188, %v172, 0
      %v268 = vsel %vm188, %v173, 0
      %v271 = vsel %vm188, %v174, 0
      %v274 = vsel %vm188, %v175, 0
      %v277 = vsel %vm188, %v176, 0
      %v280 = vsel %vm188, %v177, 0
      %v283 = vsel %vm188, %v178, 0
      %vm285 = vcmask 1046528
      %v287 = vsel %vm285, %v187, 0
      %289 = vmatprep.subr.mxu0 0.0
      %290 = vmatpush1.msra.mxu0 %v179
      %291 = vmatprep.subr.mxu0 0.0
      %292 = vmatpush1.msra.mxu0 %v180
      %293 = vmatprep.subr.mxu0 0.0
      %294 = vmatpush1.msra.mxu0 %v181
      %295 = vmatprep.subr.mxu0 0.0
      %296 = vmatpush1.msra.mxu0 %v182
      %297 = vmatprep.subr.mxu0 0.0
      %298 = vmatpush1.msra.mxu0 %v183
      %299 = vmatprep.subr.mxu0 0.0
      %300 = vmatpush1.msra.mxu0 %v184
      %301 = vmatprep.subr.mxu0 0.0
      %302 = vmatpush1.msra.mxu0 %v185
      %303 = vmatprep.subr.mxu0 0.0
      %304 = vmatpush1.msra.mxu0 %v186
      %305 = vmatprep.subr.mxu0 0.0
      %306 = vmatpush1.msra.mxu0 %v287
      %307 = vmatprep.subr.mxu0 0.0
      %308 = vmatpush1.msra.mxu0 0.0
      %309 = vmatprep.subr.mxu0 0.0
      %310 = vmatpush1.msra.mxu0 0.0
      %311 = vmatprep.subr.mxu0 0.0
      %312 = vmatpush1.msra.mxu0 0.0
      %313 = vmatprep.subr.mxu0 0.0
      %314 = vmatpush1.msra.mxu0 0.0
      %315 = vmatprep.subr.mxu0 0.0
      %316 = vmatpush1.msra.mxu0 0.0
      %317 = vmatprep.subr.mxu0 0.0
      %318 = vmatpush1.msra.mxu0 0.0
      %319 = vmatprep.subr.mxu0 0.0
      %320 = vmatpush1.msra.mxu0 0.0
      %321 = vmatprep.subr.mxu0 0.0
      %322 = vmatpush1.msra.mxu0 0.0
      %323 = vmatprep.subr.mxu0 0.0
      %324 = vmatpush1.msra.mxu0 0.0
      %325 = vmatprep.subr.mxu0 0.0
      %326 = vmatpush1.msra.mxu0 0.0
      %327 = vmatprep.subr.mxu0 0.0
      %328 = vmatpush1.msra.mxu0 0.0
      %329 = vmatprep.subr.mxu0 0.0
      %330 = vmatpush1.msra.mxu0 0.0
      %331 = vmatprep.subr.mxu0 0.0
      %332 = vmatpush1.msra.mxu0 0.0
      %333 = vmatprep.subr.mxu0 0.0
      %334 = vmatpush1.msra.mxu0 0.0
      %335 = vmatprep.subr.mxu0 0.0
      %336 = vmatpush1.msra.mxu0 0.0
      %337 = vmatprep.subr.mxu0 0.0
      %338 = vmatpush1.msra.mxu0 0.0
      %339 = vmatprep.subr.mxu0 0.0
      %340 = vmatpush1.msra.mxu0 0.0
      %341 = vmatprep.subr.mxu0 0.0
      %342 = vmatpush1.msra.mxu0 0.0
      %343 = vmatprep.subr.mxu0 0.0
      %344 = vmatpush1.msra.mxu0 0.0
      %345 = vmatprep.subr.mxu0 0.0
      %346 = vmatpush1.msra.mxu0 0.0
      %347 = vmatprep.subr.mxu0 0.0
      %348 = vmatpush1.msra.mxu0 0.0
      %349 = vmatprep.subr.mxu0 0.0
      %350 = vmatpush1.msra.mxu0 0.0
      %351 = vmatprep.subr.mxu0 0.0
      %352 = vmatpush1.msra.mxu0 0.0
      %353 = vmatprep.mubr.f32.mxu0 0.0
      %354 = vmatmul.mubr.f32.gmra.mrb[0].mxu0 %v190
      %v355 = vpop.f32.mrb[0].mxu0
      %v356 = vadd.f32 0.0, %v355
      %v357 = vpop.f32.mrb[0].mxu0
      %358 = vmatprep.mubr.f32.mxu0 0.0
      %359 = vmatmul.mubr.f32.gmra.mrb[0].mxu0 %v193
      %v360 = vpop.f32.mrb[0].mxu0
      %v361 = vadd.f32 0.0, %v360
      %v362 = vpop.f32.mrb[0].mxu0
      %363 = vmatprep.mubr.f32.mxu0 0.0
      %364 = vmatmul.mubr.f32.gmra.mrb[0].mxu0 %v196
      %v365 = vpop.f32.mrb[0].mxu0
      %v366 = vadd.f32 0.0, %v365
      %v367 = vpop.f32.mrb[0].mxu0
      %368 = vmatprep.mubr.f32.mxu0 0.0
      %369 = vmatmul.mubr.f32.gmra.mrb[0].mxu0 %v199
      %v370 = vpop.f32.mrb[0].mxu0
      %v371 = vadd.f32 0.0, %v370
      %v372 = vpop.f32.mrb[0].mxu0
      %373 = vmatprep.mubr.f32.mxu0 0.0
      %374 = vmatmul.mubr.f32.gmra.mrb[0].mxu0 %v202
      %v375 = vpop.f32.mrb[0].mxu0
      %v376 = vadd.f32 0.0, %v375
      %v377 = vpop.f32.mrb[0].mxu0
      %378 = vmatprep.mubr.f32.mxu0 0.0
      %379 = vmatmul.mubr.f32.gmra.mrb[0].mxu0 %v205
      %v380 = vpop.f32.mrb[0].mxu0
      %v381 = vadd.f32 0.0, %v380
      %v382 = vpop.f32.mrb[0].mxu0
      %383 = vmatprep.mubr.f32.mxu0 0.0
      %384 = vmatmul.mubr.f32.gmra.mrb[0].mxu0 %v208
      %v385 = vpop.f32.mrb[0].mxu0
      %v386 = vadd.f32 0.0, %v385
      %v387 = vpop.f32.mrb[0].mxu0
      %388 = vmatprep.mubr.f32.mxu0 0.0
      %389 = vmatmul.mubr.f32.gmra.mrb[0].mxu0 %v211
      %v390 = vpop.f32.mrb[0].mxu0
      %v391 = vadd.f32 0.0, %v390
      %v392 = vpop.f32.mrb[0].mxu0
      %393 = vmatprep.mubr.f32.mxu0 0.0
      %394 = vmatmul.mubr.f32.gmra.mrb[0].mxu0 %v214
      %v395 = vpop.f32.mrb[0].mxu0
      %v396 = vadd.f32 0.0, %v395
      %v397 = vpop.f32.mrb[0].mxu0
      %398 = vmatprep.mubr.f32.mxu0 0.0
      %399 = vmatmul.mubr.f32.gmra.mrb[0].mxu0 %v217
      %v400 = vpop.f32.mrb[0].mxu0
      %v401 = vadd.f32 0.0, %v400
      %v402 = vpop.f32.mrb[0].mxu0
      %403 = vmatprep.mubr.f32.mxu0 0.0
      %404 = vmatmul.mubr.f32.gmra.mrb[0].mxu0 %v220
      %v405 = vpop.f32.mrb[0].mxu0
      %v406 = vadd.f32 0.0, %v405
      %v407 = vpop.f32.mrb[0].mxu0
      %408 = vmatprep.mubr.f32.mxu0 0.0
      %409 = vmatmul.mubr.f32.gmra.mrb[0].mxu0 %v223
      %v410 = vpop.f32.mrb[0].mxu0
      %v411 = vadd.f32 0.0, %v410
      %v412 = vpop.f32.mrb[0].mxu0
      %413 = vmatprep.mubr.f32.mxu0 0.0
      %414 = vmatmul.mubr.f32.gmra.mrb[0].mxu0 %v226
      %v415 = vpop.f32.mrb[0].mxu0
      %v416 = vadd.f32 0.0, %v415
      %v417 = vpop.f32.mrb[0].mxu0
      %418 = vmatprep.mubr.f32.mxu0 0.0
      %419 = vmatmul.mubr.f32.gmra.mrb[0].mxu0 %v229
      %v420 = vpop.f32.mrb[0].mxu0
      %v421 = vadd.f32 0.0, %v420
      %v422 = vpop.f32.mrb[0].mxu0
      %423 = vmatprep.mubr.f32.mxu0 0.0
      %424 = vmatmul.mubr.f32.gmra.mrb[0].mxu0 %v232
      %v425 = vpop.f32.mrb[0].mxu0
      %v426 = vadd.f32 0.0, %v425
      %v427 = vpop.f32.mrb[0].mxu0
      %428 = vmatprep.mubr.f32.mxu0 0.0
      %429 = vmatmul.mubr.f32.gmra.mrb[0].mxu0 %v235
      %v430 = vpop.f32.mrb[0].mxu0
      %v431 = vadd.f32 0.0, %v430
      %v432 = vpop.f32.mrb[0].mxu0
      %433 = vmatprep.mubr.f32.mxu0 0.0
      %434 = vmatmul.mubr.f32.gmra.mrb[0].mxu0 %v238
      %v435 = vpop.f32.mrb[0].mxu0
      %v436 = vadd.f32 0.0, %v435
      %v437 = vpop.f32.mrb[0].mxu0
      %438 = vmatprep.mubr.f32.mxu0 0.0
      %439 = vmatmul.mubr.f32.gmra.mrb[0].mxu0 %v241
      %v440 = vpop.f32.mrb[0].mxu0
      %v441 = vadd.f32 0.0, %v440
      %v442 = vpop.f32.mrb[0].mxu0
      %443 = vmatprep.mubr.f32.mxu0 0.0
      %444 = vmatmul.mubr.f32.gmra.mrb[0].mxu0 %v244
      %v445 = vpop.f32.mrb[0].mxu0
      %v446 = vadd.f32 0.0, %v445
      %v447 = vpop.f32.mrb[0].mxu0
      %448 = vmatprep.mubr.f32.mxu0 0.0
      %449 = vmatmul.mubr.f32.gmra.mrb[0].mxu0 %v247
      %v450 = vpop.f32.mrb[0].mxu0
      %v451 = vadd.f32 0.0, %v450
      %v452 = vpop.f32.mrb[0].mxu0
      %453 = vmatprep.mubr.f32.mxu0 0.0
      %454 = vmatmul.mubr.f32.gmra.mrb[0].mxu0 %v250
      %v455 = vpop.f32.mrb[0].mxu0
      %v456 = vadd.f32 0.0, %v455
      %v457 = vpop.f32.mrb[0].mxu0
      %458 = vmatprep.mubr.f32.mxu0 0.0
      %459 = vmatmul.mubr.f32.gmra.mrb[0].mxu0 %v253
      %v460 = vpop.f32.mrb[0].mxu0
      %v461 = vadd.f32 0.0, %v460
      %v462 = vpop.f32.mrb[0].mxu0
      %463 = vmatprep.mubr.f32.mxu0 0.0
      %464 = vmatmul.mubr.f32.gmra.mrb[0].mxu0 %v256
      %v465 = vpop.f32.mrb[0].mxu0
      %v466 = vadd.f32 0.0, %v465
      %v467 = vpop.f32.mrb[0].mxu0
      %468 = vmatprep.mubr.f32.mxu0 0.0
      %469 = vmatmul.mubr.f32.gmra.mrb[0].mxu0 %v259
      %v470 = vpop.f32.mrb[0].mxu0
      %v471 = vadd.f32 0.0, %v470
      %v472 = vpop.f32.mrb[0].mxu0
      %473 = vmatprep.mubr.f32.mxu0 0.0
      %474 = vmatmul.mubr.f32.gmra.mrb[0].mxu0 %v262
      %v475 = vpop.f32.mrb[0].mxu0
      %v476 = vadd.f32 0.0, %v475
      %v477 = vpop.f32.mrb[0].mxu0
      %478 = vmatprep.mubr.f32.mxu0 0.0
      %479 = vmatmul.mubr.f32.gmra.mrb[0].mxu0 %v265
      %v480 = vpop.f32.mrb[0].mxu0
      %v481 = vadd.f32 0.0, %v480
      %v482 = vpop.f32.mrb[0].mxu0
      %483 = vmatprep.mubr.f32.mxu0 0.0
      %484 = vmatmul.mubr.f32.gmra.mrb[0].mxu0 %v268
      %v485 = vpop.f32.mrb[0].mxu0
      %v486 = vadd.f32 0.0, %v485
      %v487 = vpop.f32.mrb[0].mxu0
      %488 = vmatprep.mubr.f32.mxu0 0.0
      %489 = vmatmul.mubr.f32.gmra.mrb[0].mxu0 %v271
      %v490 = vpop.f32.mrb[0].mxu0
      %v491 = vadd.f32 0.0, %v490
      %v492 = vpop.f32.mrb[0].mxu0
      %493 = vmatprep.mubr.f32.mxu0 0.0
      %494 = vmatmul.mubr.f32.gmra.mrb[0].mxu0 %v274
      %v495 = vpop.f32.mrb[0].mxu0
      %v496 = vadd.f32 0.0, %v495
      %v497 = vpop.f32.mrb[0].mxu0
      %498 = vmatprep.mubr.f32.mxu0 0.0
      %499 = vmatmul.mubr.f32.gmra.mrb[0].mxu0 %v277
      %v500 = vpop.f32.mrb[0].mxu0
      %v501 = vadd.f32 0.0, %v500
      %v502 = vpop.f32.mrb[0].mxu0
      %503 = vmatprep.mubr.f32.mxu0 0.0
      %504 = vmatmul.mubr.f32.gmra.mrb[0].mxu0 %v280
      %v505 = vpop.f32.mrb[0].mxu0
      %v506 = vadd.f32 0.0, %v505
      %v507 = vpop.f32.mrb[0].mxu0
      %508 = vmatprep.mubr.f32.mxu0 0.0
      %509 = vmatmul.mubr.f32.gmra.mrb[0].mxu0 %v283
      %v510 = vpop.f32.mrb[0].mxu0
      %v511 = vadd.f32 0.0, %v510
      %v512 = vpop.f32.mrb[0].mxu0
      %513 = vdwg.mxu0
      %v514 = vpack.c.bf16 %v361, %v356
      %v515 = vpack.c.bf16 %v371, %v366
      %v516 = vpack.c.bf16 %v381, %v376
      %v517 = vpack.c.bf16 %v391, %v386
      %v518 = vpack.c.bf16 %v401, %v396
      %v519 = vpack.c.bf16 %v411, %v406
      %v520 = vpack.c.bf16 %v421, %v416
      %v521 = vpack.c.bf16 %v431, %v426
      %v522 = vpack.c.bf16 %v441, %v436
      %v523 = vpack.c.bf16 %v451, %v446
      %v524 = vpack.c.bf16 %v461, %v456
      %v525 = vpack.c.bf16 %v471, %v466
      %v526 = vpack.c.bf16 %v481, %v476
      %v527 = vpack.c.bf16 %v491, %v486
      %v528 = vpack.c.bf16 %v501, %v496
      %v529 = vpack.c.bf16 %v511, %v506
      %v546 = vunpack.c.l.b16 %v514
      %v547 = vunpack.c.h.b16 %v514
      %v548 = vunpack.c.l.b16 %v515
      %v549 = vunpack.c.h.b16 %v515
      %v550 = vunpack.c.l.b16 %v516
      %v551 = vunpack.c.h.b16 %v516
      %v552 = vunpack.c.l.b16 %v517
      %v553 = vunpack.c.h.b16 %v517
      %v554 = vunpack.c.l.b16 %v518
      %v555 = vunpack.c.h.b16 %v518
      %v556 = vunpack.c.l.b16 %v519
      %v557 = vunpack.c.h.b16 %v519
      %v558 = vunpack.c.l.b16 %v520
      %v559 = vunpack.c.h.b16 %v520
      %v560 = vunpack.c.l.b16 %v521
      %v561 = vunpack.c.h.b16 %v521
      %v562 = vunpack.c.l.b16 %v522
      %v563 = vunpack.c.h.b16 %v522
      %v564 = vunpack.c.l.b16 %v523
      %v565 = vunpack.c.h.b16 %v523
      %v566 = vunpack.c.l.b16 %v524
      %v567 = vunpack.c.h.b16 %v524
      %v568 = vunpack.c.l.b16 %v525
      %v569 = vunpack.c.h.b16 %v525
      %v570 = vunpack.c.l.b16 %v526
      %v571 = vunpack.c.h.b16 %v526
      %v572 = vunpack.c.l.b16 %v527
      %v573 = vunpack.c.h.b16 %v527
      %v574 = vunpack.c.l.b16 %v528
      %v575 = vunpack.c.h.b16 %v528
      %v576 = vunpack.c.l.b16 %v529
      %v577 = vunpack.c.h.b16 %v529
      %v578 = vpack.c.b16 %v546, %v546
      %v579 = vpack.c.b16 %v547, %v547
      %v580 = vpack.c.b16 %v548, %v548
      %v581 = vpack.c.b16 %v549, %v549
      %v582 = vpack.c.b16 %v550, %v550
      %v583 = vpack.c.b16 %v551, %v551
      %v584 = vpack.c.b16 %v552, %v552
      %v585 = vpack.c.b16 %v553, %v553
      %v586 = vpack.c.b16 %v554, %v554
      %v587 = vpack.c.b16 %v555, %v555
      %v588 = vpack.c.b16 %v556, %v556
      %v589 = vpack.c.b16 %v557, %v557
      %v590 = vpack.c.b16 %v558, %v558
      %v591 = vpack.c.b16 %v559, %v559
      %v592 = vpack.c.b16 %v560, %v560
      %v593 = vpack.c.b16 %v561, %v561
      %v594 = vpack.c.b16 %v562, %v562
      %v595 = vpack.c.b16 %v563, %v563
      %v596 = vpack.c.b16 %v564, %v564
      %v597 = vpack.c.b16 %v565, %v565
      %v598 = vpack.c.b16 %v566, %v566
      %v599 = vpack.c.b16 %v567, %v567
      %v600 = vpack.c.b16 %v568, %v568
      %v601 = vpack.c.b16 %v569, %v569
      %v602 = vpack.c.b16 %v570, %v570
      %v603 = vpack.c.b16 %v571, %v571
      %v604 = vpack.c.b16 %v572, %v572
      %v605 = vpack.c.b16 %v573, %v573
      %v606 = vpack.c.b16 %v574, %v574
      %v607 = vpack.c.b16 %v575, %v575
      %v608 = vpack.c.b16 %v576, %v576
      %v609 = vpack.c.b16 %v577, %v577
      %642 = vst [vmem:[%s145] sm:$0xf] %v578
      %643 = vst [vmem:[%s145 + $0x4] sm:$0xf] %v579
      %644 = vst [vmem:[%s145 + $0x8] sm:$0xf] %v580
      %645 = vst [vmem:[%s145 + $0xc] sm:$0xf] %v581
      %646 = vst [vmem:[%s145 + $0x10] sm:$0xf] %v582
      %647 = vst [vmem:[%s145 + $0x14] sm:$0xf] %v583
      %648 = vst [vmem:[%s145 + $0x18] sm:$0xf] %v584
      %649 = vst [vmem:[%s145 + $0x1c] sm:$0xf] %v585
      %650 = vst [vmem:[%s145 + $0x20] sm:$0xf] %v586
      %651 = vst [vmem:[%s145 + $0x24] sm:$0xf] %v587
      %652 = vst [vmem:[%s145 + $0x28] sm:$0xf] %v588
      %653 = vst [vmem:[%s145 + $0x2c] sm:$0xf] %v589
      %654 = vst [vmem:[%s145 + $0x30] sm:$0xf] %v590
      %655 = vst [vmem:[%s145 + $0x34] sm:$0xf] %v591
      %656 = vst [vmem:[%s145 + $0x38] sm:$0xf] %v592
      %657 = vst [vmem:[%s145 + $0x3c] sm:$0xf] %v593
      %658 = vst [vmem:[%s145 + $0x40] sm:$0xf] %v594
      %659 = vst [vmem:[%s145 + $0x44] sm:$0xf] %v595
      %660 = vst [vmem:[%s145 + $0x48] sm:$0xf] %v596
      %661 = vst [vmem:[%s145 + $0x4c] sm:$0xf] %v597
      %662 = vst [vmem:[%s145 + $0x50] sm:$0xf] %v598
      %663 = vst [vmem:[%s145 + $0x54] sm:$0xf] %v599
      %664 = vst [vmem:[%s145 + $0x58] sm:$0xf] %v600
      %665 = vst [vmem:[%s145 + $0x5c] sm:$0xf] %v601
      %666 = vst [vmem:[%s145 + $0x60] sm:$0xf] %v602
      %667 = vst [vmem:[%s145 + $0x64] sm:$0xf] %v603
      %668 = vst [vmem:[%s145 + $0x68] sm:$0xf] %v604
      %669 = vst [vmem:[%s145 + $0x6c] sm:$0xf] %v605
      %670 = vst [vmem:[%s145 + $0x70] sm:$0xf] %v606
      %671 = vst [vmem:[%s145 + $0x74] sm:$0xf] %v607
      %672 = vst [vmem:[%s145 + $0x78] sm:$0xf] %v608
      %673 = vst [vmem:[%s145 + $0x7c] sm:$0xf] %v609
      %s674 = smul.u32 32, %s13
      %p675 = scmp.lt.s32.totalorder %s674, 63
      %s676 = scalar_select %p675, %s674, 63
      %s677 = smul.addr %s676, 4
      %s678 = scalar_lea.vmem %s2, %s677
      // Predicated region
      $region29: #{encoder_forward.4} parent=27 // pred_check
        %p679 = pneg %p78
      $region30: #{encoder_forward.4} parent=27 // pred_check_branch
        %681 = sbr.rel (%p679) target = $region32
      $region31: #{encoder_forward.4} parent=27 // pred_region
        %s682 = smul.u32 32, %s13
      $region32: #{encoder_forward.4} parent=27 // pred_fallthru
        _
    $region28: #{encoder_forward.4} parent=5 // pred_fallthru
      _
    %p683 = scmp.le.s32.totalorder 2, %s8
    // Predicated region
    $region33: #{encoder_forward.4} parent=5 // pred_check
      %p684 = pneg %p683
    $region34: #{encoder_forward.4} parent=5 // pred_check_branch
      %686 = sbr.rel (%p684) target = $region36
    $region35: #{encoder_forward.4} parent=5 // pred_region
      %s687 = ssub.s32 %s8, 2
      // Predicated region
      $region37: #{encoder_forward.4} parent=35 // pred_check
        %p688 = pneg %p84
      $region38: #{encoder_forward.4} parent=35 // pred_check_branch
        %690 = sbr.rel (%p688) target = $region40
      $region39: #{encoder_forward.4} parent=35 // pred_region
        %s691 = smul.u32 32, %s14
        %p692 = scmp.lt.s32.totalorder %s691, 63
        %s693 = scalar_select %p692, %s691, 63
        %s694 = smul.addr %s693, 4
        %s695 = scalar_lea.vmem %s2, %s694
      $region40: #{encoder_forward.4} parent=35 // pred_fallthru
        _
    $region36: #{encoder_forward.4} parent=5 // pred_fallthru
      _
  $region6: #{encoder_forward.4} parent=0 // loop_footer
    %s12 = sadd.s32 1, %s8
  $region7: #{encoder_forward.4} parent=0 // loop_footer_branch
    %7 = sbr.rel target = $region3
  $region8: #{encoder_forward.4} parent=0 // loop_exit
    _

// kernel: encoder_forward.5
$region0: #{encoder_forward.5}
  #allocation0 [shape = 'u32[]', space=smem, size = 0x4, offset = 0x4, fixed_abs, tag = 'smem constant byte address 0x4 - core index']
  #allocation1 [shape = 'u32[144,128]{1,0:T(1,128)}', space=vmem, size = 0x12000, scoped, tag = 'internal scratch']
  #allocation2 [shape = 'f32[256,128]{1,0:T(8,128)}', space=vmem, size = 0x20000, scoped, tag = 'scratch operand']
  %s0 = inlined_call_operand.vmem [shape: bf16[512,512], index: 0, kind: input, shape index: {}]
  %s1 = inlined_call_operand.vmem [shape: bf16[512,128], index: 1, kind: input, shape index: {}]
  %s2 = inlined_call_operand.vmem [shape: f32[1,128], index: 2, kind: input, shape index: {}]
  %s3 = inlined_call_operand.vmem [shape: f32[512,128], index: 3, kind: output, shape index: {}]
  %s4 = sld [smem:[#allocation0]]
  $region91: #{encoder_forward.5} parent=0
    _
  %s6 = ssub.s32 1, %s4
  %s7 = scalar_select 0, %s6, %s4
  $region1: #{encoder_forward.5} parent=0
    #allocation3 [shape = 'u8[262144]{0}', space=vmem, size = 0x40000, scoped, tag = 'input window, operand 0']
    loop: start=0, step=1, limit=6
    $region2: #{encoder_forward.5} parent=1 // loop_pre_header
      _
    $region3: #{encoder_forward.5} parent=1 // loop_header
      %s9 = sphi 0, %s13
      %p10 = scmp.ge.s32.totalorder %s9, 6
      %s16 = sphi 0, %s28
      %s17 = sphi 0, %s24
      %s18 = sphi 0, %s16
      %s19 = sphi 0, %s17
      %s20 = sphi 0, %s18
      %s21 = sphi 0, %s19
      %s33 = sphi 0, %s35
      %s36 = sphi 0, %s33
      %s37 = sphi 0, %s36
      %s53 = sphi 0, %s37
      %s59 = sphi 0, %s61
      %s62 = sphi 0, %s59
      %s63 = sphi 0, %s62
      %s79 = sphi 0, %s63
      %s83 = sphi 0, %s83
      %s85 = sphi 0, %s83
      %s86 = sphi 0, %s85
      %s100 = sphi 0, %s86
      %s106 = sphi 0, %s108
      %s109 = sphi 0, %s106
      %s110 = sphi 0, %s109
      %s126 = sphi 0, %s110
    $region4: #{encoder_forward.5} parent=1 // loop_header_branch
      %12 = sbr.rel (%p10) target = $region8
    $region5: #{encoder_forward.5} parent=1 // loop_body
      %s14 = ssub.s32 %s9, 1
      %s15 = ssub.s32 %s9, 2
      %s22 = sadd.s32 1, %s17
      %p23 = scmp.ge.s32.totalorder %s22, 2
      %s24 = scalar_select %p23, 0, %s22
      %s25 = sadd.s32 1, %s16
      %s26 = scalar_select %p23, %s25, %s16
      %p27 = scmp.ge.s32.totalorder %s26, 2
      %s28 = scalar_select %p27, 0, %s26
      %s29 = ssub.s32 %s16, %s28
      %s30 = ssub.s32 %s17, %s24
      %s31 = sor.u32 %s29, %s30
      %p32 = scmp.eq.s32.totalorder %s31, 0
      %s34 = sadd.s32 %s33, 1
      %s35 = scalar_select %p32, %s33, %s34
      %p38 = pneg %p32
      %p39 = scmp.eq.s32.totalorder %s9, 3
      %p40 = por %p38, %p39
      %p41 = scmp.ne.s32.totalorder %s33, %s36
      %p42 = scmp.eq.s32.totalorder %s9, 0
      %p43 = por %p41, %p42
      %p44 = scmp.ne.s32.totalorder %s33, %s36
      %p45 = scmp.eq.s32.totalorder %s14, 3
      %p46 = por %p44, %p45
      %p47 = scmp.ne.s32.totalorder %s36, %s37
      %p48 = scmp.eq.s32.totalorder %s14, 0
      %p49 = por %p47, %p48
      %p50 = scmp.ne.s32.totalorder %s36, %s37
      %p51 = scmp.eq.s32.totalorder %s15, 3
      %p52 = por %p50, %p51
      %p54 = scmp.ne.s32.totalorder %s37, %s53
      %p55 = scmp.eq.s32.totalorder %s15, 0
      %p56 = por %p54, %p55
      %s57 = ssub.s32 %s17, %s24
      %p58 = scmp.eq.s32.totalorder %s57, 0
      %s60 = sadd.s32 %s59, 1
      %s61 = scalar_select %p58, %s59, %s60
      %p64 = pneg %p58
      %p65 = scmp.eq.s32.totalorder %s9, 3
      %p66 = por %p64, %p65
      %p67 = scmp.ne.s32.totalorder %s59, %s62
      %p68 = scmp.eq.s32.totalorder %s9, 0
      %p69 = por %p67, %p68
      %p70 = scmp.ne.s32.totalorder %s59, %s62
      %p71 = scmp.eq.s32.totalorder %s14, 3
      %p72 = por %p70, %p71
      %p73 = scmp.ne.s32.totalorder %s62, %s63
      %p74 = scmp.eq.s32.totalorder %s14, 0
      %p75 = por %p73, %p74
      %p76 = scmp.ne.s32.totalorder %s62, %s63
      %p77 = scmp.eq.s32.totalorder %s15, 3
      %p78 = por %p76, %p77
      %p80 = scmp.ne.s32.totalorder %s63, %s79
      %p81 = scmp.eq.s32.totalorder %s15, 0
      %p82 = por %p80, %p81
      %s84 = sadd.s32 %s83, 1
      %p87 = scmp.eq.s32.totalorder %s9, 3
      %p88 = scmp.ne.s32.totalorder %s83, %s85
      %p89 = scmp.eq.s32.totalorder %s9, 0
      %p90 = por %p88, %p89
      %p91 = scmp.ne.s32.totalorder %s83, %s85
      %p92 = scmp.eq.s32.totalorder %s14, 3
      %p93 = por %p91, %p92
      %p94 = scmp.ne.s32.totalorder %s85, %s86
      %p95 = scmp.eq.s32.totalorder %s14, 0
      %p96 = por %p94, %p95
      %p97 = scmp.ne.s32.totalorder %s85, %s86
      %p98 = scmp.eq.s32.totalorder %s15, 3
      %p99 = por %p97, %p98
      %p101 = scmp.ne.s32.totalorder %s86, %s100
      %p102 = scmp.eq.s32.totalorder %s15, 0
      %p103 = por %p101, %p102
      %s104 = ssub.s32 %s16, %s28
      %p105 = scmp.eq.s32.totalorder %s104, 0
      %s107 = sadd.s32 %s106, 1
      %s108 = scalar_select %p105, %s106, %s107
      %p111 = pneg %p105
      %p112 = scmp.eq.s32.totalorder %s9, 3
      %p113 = por %p111, %p112
      %p114 = scmp.ne.s32.totalorder %s106, %s109
      %p115 = scmp.eq.s32.totalorder %s9, 0
      %p116 = por %p114, %p115
      %p117 = scmp.ne.s32.totalorder %s106, %s109
      %p118 = scmp.eq.s32.totalorder %s14, 3
      %p119 = por %p117, %p118
      %p120 = scmp.ne.s32.totalorder %s109, %s110
      %p121 = scmp.eq.s32.totalorder %s14, 0
      %p122 = por %p120, %p121
      %p123 = scmp.ne.s32.totalorder %s109, %s110
      %p124 = scmp.eq.s32.totalorder %s15, 3
      %p125 = por %p123, %p124
      %p127 = scmp.ne.s32.totalorder %s110, %s126
      %p128 = scmp.eq.s32.totalorder %s15, 0
      %p129 = por %p127, %p128
      %p130 = scmp.le.s32.totalorder 1, %s9
      %p131 = scmp.lt.s32.totalorder %s9, 5
      %p132 = pnand %p130, %p131
      %p133 = pneg %p132
      // Predicated region
      $region9: #{encoder_forward.5} parent=5 // pred_check
        _
      $region10: #{encoder_forward.5} parent=5 // pred_check_branch
        %135 = sbr.rel (%p132) target = $region12
      $region11: #{encoder_forward.5} parent=5 // pred_region
        %s136 = ssub.s32 %s9, 1
        // Predicated region
        $region13: #{encoder_forward.5} parent=11 // pred_check
          %p137 = pneg %p96
        $region14: #{encoder_forward.5} parent=11 // pred_check_branch
          %139 = sbr.rel (%p137) target = $region16
        $region15: #{encoder_forward.5} parent=11 // pred_region
          _
        $region16: #{encoder_forward.5} parent=11 // pred_fallthru
          _
      $region12: #{encoder_forward.5} parent=5 // pred_fallthru
        _
      %p140 = scmp.lt.s32.totalorder %s9, 4
      // Predicated region
      $region17: #{encoder_forward.5} parent=5 // pred_check
        %p141 = pneg %p140
      $region18: #{encoder_forward.5} parent=5 // pred_check_branch
        %143 = sbr.rel (%p141) target = $region20
      $region19: #{encoder_forward.5} parent=5 // pred_region
        // Predicated region
        $region21: #{encoder_forward.5} parent=19 // pred_check
          %p144 = pneg %p43
        $region22: #{encoder_forward.5} parent=19 // pred_check_branch
          %146 = sbr.rel (%p144) target = $region24
        $region23: #{encoder_forward.5} parent=19 // pred_region
          %s147 = sand.u32 %s33, 1
          %s148 = sand.u32 %s33, 1
          %s149 = smul.addr %s148, 256
          %s150 = scalar_lea.vmem [#allocation3], %s149
          %s151 = smul.u32 32, %s16
          %s152 = smul.u32 2, %s17
          %s153 = smul.addr %s151, 4
          %s154 = sadd.s32 %s152, %s153
          %s155 = smul.addr %s154, 4
          %s156 = scalar_lea.vmem %s0, %s155
          // Predicated region
          $region25: #{encoder_forward.5} parent=23 // pred_check
            _
          $region26: #{encoder_forward.5} parent=23 // pred_check_branch
            %158 = sbr.rel (0) target = $region28
          $region27: #{encoder_forward.5} parent=23 // pred_region
            // Predicated region
            $region29: #{encoder_forward.5} parent=27 // pred_check
              _
            $region30: #{encoder_forward.5} parent=27 // pred_check_branch
              %160 = sbr.rel (0) target = $region32
            $region31: #{encoder_forward.5} parent=27 // pred_region
              // Predicated region
              $region44: #{encoder_forward.5} parent=31 // pred_check
                _
              $region45: #{encoder_forward.5} parent=31 // pred_check_branch
                %237 = sbr.rel (0) target = $region47
              $region46: #{encoder_forward.5} parent=31 // pred_region
                loop: start=0, step=1, limit=1
                $region48: #{encoder_forward.5} parent=46 // loop_pre_header
                  _
                $region49: #{encoder_forward.5} parent=46 // loop_header
                  %s239 = sphi 0, %s243
                  %p240 = scmp.ge.s32.totalorder %s239, 1
                  %s244 = sphi %s156, %s156
                  %s245 = sphi %s150, %s150
                $region50: #{encoder_forward.5} parent=46 // loop_header_branch
                  %242 = sbr.rel (%p240) target = $region54
                $region51: #{encoder_forward.5} parent=46 // loop_body
                  %v246 = vld [vmem:[%s244] sm:$0xff]
                  %247 = vst [vmem:[%s245] sm:$0xff] %v246
                  %v248 = vld [vmem:[%s244 + $0x10] sm:$0xff]
                  %249 = vst [vmem:[%s245 + $0x8] sm:$0xff] %v248
                  %v250 = vld [vmem:[%s244 + $0x20] sm:$0xff]
                  %251 = vst [vmem:[%s245 + $0x10] sm:$0xff] %v250
                  %v252 = vld [vmem:[%s244 + $0x30] sm:$0xff]
                  %253 = vst [vmem:[%s245 + $0x18] sm:$0xff] %v252
                  %v254 = vld [vmem:[%s244 + $0x40] sm:$0xff]
                  %255 = vst [vmem:[%s245 + $0x20] sm:$0xff] %v254
                  %v256 = vld [vmem:[%s244 + $0x50] sm:$0xff]
                  %257 = vst [vmem:[%s245 + $0x28] sm:$0xff] %v256
                  %v258 = vld [vmem:[%s244 + $0x60] sm:$0xff]
                  %259 = vst [vmem:[%s245 + $0x30] sm:$0xff] %v258
                  %v260 = vld [vmem:[%s244 + $0x70] sm:$0xff]
                  %261 = vst [vmem:[%s245 + $0x38] sm:$0xff] %v260
                  %v262 = vld [vmem:[%s244 + $0x80] sm:$0xff]
                  %263 = vst [vmem:[%s245 + $0x40] sm:$0xff] %v262
                  %v264 = vld [vmem:[%s244 + $0x90] sm:$0xff]
                  %265 = vst [vmem:[%s245 + $0x48] sm:$0xff] %v264
                  %v266 = vld [vmem:[%s244 + $0xa0] sm:$0xff]
                  %267 = vst [vmem:[%s245 + $0x50] sm:$0xff] %v266
                  %v268 = vld [vmem:[%s244 + $0xb0] sm:$0xff]
                  %269 = vst [vmem:[%s245 + $0x58] sm:$0xff] %v268
                  %v270 = vld [vmem:[%s244 + $0xc0] sm:$0xff]
                  %271 = vst [vmem:[%s245 + $0x60] sm:$0xff] %v270
                  %v272 = vld [vmem:[%s244 + $0xd0] sm:$0xff]
                  %273 = vst [vmem:[%s245 + $0x68] sm:$0xff] %v272
                  %v274 = vld [vmem:[%s244 + $0xe0] sm:$0xff]
                  %275 = vst [vmem:[%s245 + $0x70] sm:$0xff] %v274
                  %v276 = vld [vmem:[%s244 + $0xf0] sm:$0xff]
                  %277 = vst [vmem:[%s245 + $0x78] sm:$0xff] %v276
                  %v278 = vld [vmem:[%s244 + $0x100] sm:$0xff]
                  %279 = vst [vmem:[%s245 + $0x80] sm:$0xff] %v278
                  %v280 = vld [vmem:[%s244 + $0x110] sm:$0xff]
                  %281 = vst [vmem:[%s245 + $0x88] sm:$0xff] %v280
                  %v282 = vld [vmem:[%s244 + $0x120] sm:$0xff]
                  %283 = vst [vmem:[%s245 + $0x90] sm:$0xff] %v282
                  %v284 = vld [vmem:[%s244 + $0x130] sm:$0xff]
                  %285 = vst [vmem:[%s245 + $0x98] sm:$0xff] %v284
                  %v286 = vld [vmem:[%s244 + $0x140] sm:$0xff]
                  %287 = vst [vmem:[%s245 + $0xa0] sm:$0xff] %v286
                  %v288 = vld [vmem:[%s244 + $0x150] sm:$0xff]
                  %289 = vst [vmem:[%s245 + $0xa8] sm:$0xff] %v288
                  %v290 = vld [vmem:[%s244 + $0x160] sm:$0xff]
                  %291 = vst [vmem:[%s245 + $0xb0] sm:$0xff] %v290
                  %v292 = vld [vmem:[%s244 + $0x170] sm:$0xff]
                  %293 = vst [vmem:[%s245 + $0xb8] sm:$0xff] %v292
                  %v294 = vld [vmem:[%s244 + $0x180] sm:$0xff]
                  %295 = vst [vmem:[%s245 + $0xc0] sm:$0xff] %v294
                  %v296 = vld [vmem:[%s244 + $0x190] sm:$0xff]
                  %297 = vst [vmem:[%s245 + $0xc8] sm:$0xff] %v296
                  %v298 = vld [vmem:[%s244 + $0x1a0] sm:$0xff]
                  %299 = vst [vmem:[%s245 + $0xd0] sm:$0xff] %v298
                  %v300 = vld [vmem:[%s244 + $0x1b0] sm:$0xff]
                  %301 = vst [vmem:[%s245 + $0xd8] sm:$0xff] %v300
                  %v302 = vld [vmem:[%s244 + $0x1c0] sm:$0xff]
                  %303 = vst [vmem:[%s245 + $0xe0] sm:$0xff] %v302
                  %v304 = vld [vmem:[%s244 + $0x1d0] sm:$0xff]
                  %305 = vst [vmem:[%s245 + $0xe8] sm:$0xff] %v304
                  %v306 = vld [vmem:[%s244 + $0x1e0] sm:$0xff]
                  %307 = vst [vmem:[%s245 + $0xf0] sm:$0xff] %v306
                  %v308 = vld [vmem:[%s244 + $0x1f0] sm:$0xff]
                  %309 = vst [vmem:[%s245 + $0xf8] sm:$0xff] %v308
                $region52: #{encoder_forward.5} parent=46 // loop_footer
                  %s243 = sadd.s32 1, %s239
                $region53: #{encoder_forward.5} parent=46 // loop_footer_branch
                  %238 = sbr.rel target = $region49
                $region54: #{encoder_forward.5} parent=46 // loop_exit
                  _
              $region47: #{encoder_forward.5} parent=31 // pred_fallthru
                _
              // Predicated region
              $region55: #{encoder_forward.5} parent=31 // pred_check
                _
              $region56: #{encoder_forward.5} parent=31 // pred_check_branch
                %311 = sbr.rel target = $region58
              $region57: #{encoder_forward.5} parent=31 // pred_region
                _
              $region58: #{encoder_forward.5} parent=31 // pred_fallthru
                _
            $region32: #{encoder_forward.5} parent=27 // pred_fallthru
              _
            // Predicated region
            $region33: #{encoder_forward.5} parent=27 // pred_check
              _
            $region34: #{encoder_forward.5} parent=27 // pred_check_branch
              %162 = sbr.rel target = $region36
            $region35: #{encoder_forward.5} parent=27 // pred_region
              loop: start=0, step=1, limit=1
              $region37: #{encoder_forward.5} parent=35 // loop_pre_header
                _
              $region38: #{encoder_forward.5} parent=35 // loop_header
                %s165 = sphi 0, %s169
                %p166 = scmp.ge.s32.totalorder %s165, 1
                %s170 = sphi %s156, %s156
                %s171 = sphi %s150, %s150
              $region39: #{encoder_forward.5} parent=35 // loop_header_branch
                %168 = sbr.rel (%p166) target = $region43
              $region40: #{encoder_forward.5} parent=35 // loop_body
                %v172 = vld [vmem:[%s170] sm:$0xff]
                %173 = vst [vmem:[%s171] sm:$0xff] %v172
                %v174 = vld [vmem:[%s170 + $0x10] sm:$0xff]
                %175 = vst [vmem:[%s171 + $0x8] sm:$0xff] %v174
                %v176 = vld [vmem:[%s170 + $0x20] sm:$0xff]
                %177 = vst [vmem:[%s171 + $0x10] sm:$0xff] %v176
                %v178 = vld [vmem:[%s170 + $0x30] sm:$0xff]
                %179 = vst [vmem:[%s171 + $0x18] sm:$0xff] %v178
                %v180 = vld [vmem:[%s170 + $0x40] sm:$0xff]
                %181 = vst [vmem:[%s171 + $0x20] sm:$0xff] %v180
                %v182 = vld [vmem:[%s170 + $0x50] sm:$0xff]
                %183 = vst [vmem:[%s171 + $0x28] sm:$0xff] %v182
                %v184 = vld [vmem:[%s170 + $0x60] sm:$0xff]
                %185 = vst [vmem:[%s171 + $0x30] sm:$0xff] %v184
                %v186 = vld [vmem:[%s170 + $0x70] sm:$0xff]
                %187 = vst [vmem:[%s171 + $0x38] sm:$0xff] %v186
                %v188 = vld [vmem:[%s170 + $0x80] sm:$0xff]
                %189 = vst [vmem:[%s171 + $0x40] sm:$0xff] %v188
                %v190 = vld [vmem:[%s170 + $0x90] sm:$0xff]
                %191 = vst [vmem:[%s171 + $0x48] sm:$0xff] %v190
                %v192 = vld [vmem:[%s170 + $0xa0] sm:$0xff]
                %193 = vst [vmem:[%s171 + $0x50] sm:$0xff] %v192
                %v194 = vld [vmem:[%s170 + $0xb0] sm:$0xff]
                %195 = vst [vmem:[%s171 + $0x58] sm:$0xff] %v194
                %v196 = vld [vmem:[%s170 + $0xc0] sm:$0xff]
                %197 = vst [vmem:[%s171 + $0x60] sm:$0xff] %v196
                %v198 = vld [vmem:[%s170 + $0xd0] sm:$0xff]
                %199 = vst [vmem:[%s171 + $0x68] sm:$0xff] %v198
                %v200 = vld [vmem:[%s170 + $0xe0] sm:$0xff]
                %201 = vst [vmem:[%s171 + $0x70] sm:$0xff] %v200
                %v202 = vld [vmem:[%s170 + $0xf0] sm:$0xff]
                %203 = vst [vmem:[%s171 + $0x78] sm:$0xff] %v202
                %v204 = vld [vmem:[%s170 + $0x100] sm:$0xff]
                %205 = vst [vmem:[%s171 + $0x80] sm:$0xff] %v204
                %v206 = vld [vmem:[%s170 + $0x110] sm:$0xff]
                %207 = vst [vmem:[%s171 + $0x88] sm:$0xff] %v206
                %v208 = vld [vmem:[%s170 + $0x120] sm:$0xff]
                %209 = vst [vmem:[%s171 + $0x90] sm:$0xff] %v208
                %v210 = vld [vmem:[%s170 + $0x130] sm:$0xff]
                %211 = vst [vmem:[%s171 + $0x98] sm:$0xff] %v210
                %v212 = vld [vmem:[%s170 + $0x140] sm:$0xff]
                %213 = vst [vmem:[%s171 + $0xa0] sm:$0xff] %v212
                %v214 = vld [vmem:[%s170 + $0x150] sm:$0xff]
                %215 = vst [vmem:[%s171 + $0xa8] sm:$0xff] %v214
                %v216 = vld [vmem:[%s170 + $0x160] sm:$0xff]
                %217 = vst [vmem:[%s171 + $0xb0] sm:$0xff] %v216
                %v218 = vld [vmem:[%s170 + $0x170] sm:$0xff]
                %219 = vst [vmem:[%s171 + $0xb8] sm:$0xff] %v218
                %v220 = vld [vmem:[%s170 + $0x180] sm:$0xff]
                %221 = vst [vmem:[%s171 + $0xc0] sm:$0xff] %v220
                %v222 = vld [vmem:[%s170 + $0x190] sm:$0xff]
                %223 = vst [vmem:[%s171 + $0xc8] sm:$0xff] %v222
                %v224 = vld [vmem:[%s170 + $0x1a0] sm:$0xff]
                %225 = vst [vmem:[%s171 + $0xd0] sm:$0xff] %v224
                %v226 = vld [vmem:[%s170 + $0x1b0] sm:$0xff]
                %227 = vst [vmem:[%s171 + $0xd8] sm:$0xff] %v226
                %v228 = vld [vmem:[%s170 + $0x1c0] sm:$0xff]
                %229 = vst [vmem:[%s171 + $0xe0] sm:$0xff] %v228
                %v230 = vld [vmem:[%s170 + $0x1d0] sm:$0xff]
                %231 = vst [vmem:[%s171 + $0xe8] sm:$0xff] %v230
                %v232 = vld [vmem:[%s170 + $0x1e0] sm:$0xff]
                %233 = vst [vmem:[%s171 + $0xf0] sm:$0xff] %v232
                %v234 = vld [vmem:[%s170 + $0x1f0] sm:$0xff]
                %235 = vst [vmem:[%s171 + $0xf8] sm:$0xff] %v234
              $region41: #{encoder_forward.5} parent=35 // loop_footer
                %s169 = sadd.s32 1, %s165
              $region42: #{encoder_forward.5} parent=35 // loop_footer_branch
                %164 = sbr.rel target = $region38
              $region43: #{encoder_forward.5} parent=35 // loop_exit
                _
            $region36: #{encoder_forward.5} parent=27 // pred_fallthru
              _
          $region28: #{encoder_forward.5} parent=23 // pred_fallthru
            _
          %312 = vnop
        $region24: #{encoder_forward.5} parent=19 // pred_fallthru
          _
        // Predicated region
        $region59: #{encoder_forward.5} parent=19 // pred_check
          %p313 = pneg %p69
        $region60: #{encoder_forward.5} parent=19 // pred_check_branch
          %315 = sbr.rel (%p313) target = $region62
        $region61: #{encoder_forward.5} parent=19 // pred_region
          %s316 = smul.u32 32, %s17
          %p317 = scmp.lt.s32.totalorder %s316, 63
          %s318 = scalar_select %p317, %s316, 63
          %s319 = smul.addr %s318, 4
          %s320 = scalar_lea.vmem %s1, %s319
          %s321 = smul.u32 32, %s17
        $region62: #{encoder_forward.5} parent=19 // pred_fallthru
          _
      $region20: #{encoder_forward.5} parent=5 // pred_fallthru
        _
      %p322 = scmp.le.s32.totalorder 1, %s9
      %p323 = scmp.lt.s32.totalorder %s9, 5
      %p324 = pnand %p322, %p323
      %p325 = pneg %p324
      // Predicated region
      $region63: #{encoder_forward.5} parent=5 // pred_check
        _
      $region64: #{encoder_forward.5} parent=5 // pred_check_branch
        %327 = sbr.rel (%p324) target = $region66
      $region65: #{encoder_forward.5} parent=5 // pred_region
        %s328 = ssub.s32 %s9, 1
        %s329 = sand.u32 %s36, 1
        %s330 = sand.u32 %s36, 1
        %s331 = smul.addr %s330, 256
        %s332 = scalar_lea.vmem [#allocation3], %s331
        // Predicated region
        $region67: #{encoder_forward.5} parent=65 // pred_check
          %p333 = pneg %p49
        $region68: #{encoder_forward.5} parent=65 // pred_check_branch
          %335 = sbr.rel (%p333) target = $region70
        $region69: #{encoder_forward.5} parent=65 // pred_region
          _
        $region70: #{encoder_forward.5} parent=65 // pred_fallthru
          _
        %s336 = sand.u32 %s36, 1
        %s337 = sand.u32 %s36, 1
        %s338 = smul.addr %s337, 256
        %s339 = scalar_lea.vmem [#allocation3], %s338
        %p340 = pneg %p49
        %p341 = pneg %p46
        %s342 = smul.u32 32, %s19
        %p343 = scmp.lt.s32.totalorder %s342, 63
        %s344 = scalar_select %p343, %s342, 63
        %s345 = smul.addr %s344, 4
        %s346 = scalar_lea.vmem %s1, %s345
        %p347 = pneg %p75
        %p348 = pneg %p72
        %p349 = pneg %p96
        %p350 = pneg %p93
        %p351 = pneg %p122
        %p352 = pneg %p119
        %s353 = smul.u32 32, %s18
        %p354 = scmp.lt.s32.totalorder %s353, 63
        %s355 = scalar_select %p354, %s353, 63
        %s356 = smul.addr %s355, 8
        %s357 = scalar_lea.vmem %s3, %s356
        %s358 = smul.u32 32, %s18
        %s359 = smul.u32 2, %s19
        %s360 = smul.u32 32, %s19
        %p361 = scmp.lt.s32.totalorder %s360, 63
        %s362 = scalar_select %p361, %s360, 63
        %s363 = smul.addr %s362, 4
        %s364 = scalar_lea.vmem %s1, %s363
        %s365 = smul.u32 32, %s19
        %s366 = smul.u32 32, %s18
        %p367 = scmp.lt.s32.totalorder %s366, 63
        %s368 = scalar_select %p367, %s366, 63
        %s369 = smul.addr %s368, 8
        %s370 = scalar_lea.vmem %s3, %s369
        %s371 = smul.u32 32, %s18
        %p373 = scmp.eq.s32.totalorder %s19, 0
        // Predicated region
        $region71: #{encoder_forward.5} parent=65 // pred_check
          %p374 = pneg %p373
        $region72: #{encoder_forward.5} parent=65 // pred_check_branch
          %376 = sbr.rel (%p374) target = $region74
        $region73: #{encoder_forward.5} parent=65 // pred_region
          %377 = vst [vmem:[#allocation2] sm:$0xff] 0.0
          %378 = vst [vmem:[#allocation2 + $0x8] sm:$0xff] 0.0
          %379 = vst [vmem:[#allocation2 + $0x10] sm:$0xff] 0.0
          %380 = vst [vmem:[#allocation2 + $0x18] sm:$0xff] 0.0
          %381 = vst [vmem:[#allocation2 + $0x20] sm:$0xff] 0.0
          %382 = vst [vmem:[#allocation2 + $0x28] sm:$0xff] 0.0
          %383 = vst [vmem:[#allocation2 + $0x30] sm:$0xff] 0.0
          %384 = vst [vmem:[#allocation2 + $0x38] sm:$0xff] 0.0
          %385 = vst [vmem:[#allocation2 + $0x40] sm:$0xff] 0.0
          %386 = vst [vmem:[#allocation2 + $0x48] sm:$0xff] 0.0
          %387 = vst [vmem:[#allocation2 + $0x50] sm:$0xff] 0.0
          %388 = vst [vmem:[#allocation2 + $0x58] sm:$0xff] 0.0
          %389 = vst [vmem:[#allocation2 + $0x60] sm:$0xff] 0.0
          %390 = vst [vmem:[#allocation2 + $0x68] sm:$0xff] 0.0
          %391 = vst [vmem:[#allocation2 + $0x70] sm:$0xff] 0.0
          %392 = vst [vmem:[#allocation2 + $0x78] sm:$0xff] 0.0
          %393 = vst [vmem:[#allocation2 + $0x80] sm:$0xff] 0.0
          %394 = vst [vmem:[#allocation2 + $0x88] sm:$0xff] 0.0
          %395 = vst [vmem:[#allocation2 + $0x90] sm:$0xff] 0.0
          %396 = vst [vmem:[#allocation2 + $0x98] sm:$0xff] 0.0
          %397 = vst [vmem:[#allocation2 + $0xa0] sm:$0xff] 0.0
          %398 = vst [vmem:[#allocation2 + $0xa8] sm:$0xff] 0.0
          %399 = vst [vmem:[#allocation2 + $0xb0] sm:$0xff] 0.0
          %400 = vst [vmem:[#allocation2 + $0xb8] sm:$0xff] 0.0
          %401 = vst [vmem:[#allocation2 + $0xc0] sm:$0xff] 0.0
          %402 = vst [vmem:[#allocation2 + $0xc8] sm:$0xff] 0.0
          %403 = vst [vmem:[#allocation2 + $0xd0] sm:$0xff] 0.0
          %404 = vst [vmem:[#allocation2 + $0xd8] sm:$0xff] 0.0
          %405 = vst [vmem:[#allocation2 + $0xe0] sm:$0xff] 0.0
          %406 = vst [vmem:[#allocation2 + $0xe8] sm:$0xff] 0.0
          %407 = vst [vmem:[#allocation2 + $0xf0] sm:$0xff] 0.0
          %408 = vst [vmem:[#allocation2 + $0xf8] sm:$0xff] 0.0
        $region74: #{encoder_forward.5} parent=65 // pred_fallthru
          _
        %v409 = vld [vmem:[#allocation2] sm:$0xff]
        %v410 = vld [vmem:[#allocation2 + $0x8] sm:$0xff]
        %v411 = vld [vmem:[#allocation2 + $0x10] sm:$0xff]
        %v412 = vld [vmem:[#allocation2 + $0x18] sm:$0xff]
        %v413 = vld [vmem:[#allocation2 + $0x20] sm:$0xff]
        %v414 = vld [vmem:[#allocation2 + $0x28] sm:$0xff]
        %v415 = vld [vmem:[#allocation2 + $0x30] sm:$0xff]
        %v416 = vld [vmem:[#allocation2 + $0x38] sm:$0xff]
        %v417 = vld [vmem:[#allocation2 + $0x40] sm:$0xff]
        %v418 = vld [vmem:[#allocation2 + $0x48] sm:$0xff]
        %v419 = vld [vmem:[#allocation2 + $0x50] sm:$0xff]
        %v420 = vld [vmem:[#allocation2 + $0x58] sm:$0xff]
        %v421 = vld [vmem:[#allocation2 + $0x60] sm:$0xff]
        %v422 = vld [vmem:[#allocation2 + $0x68] sm:$0xff]
        %v423 = vld [vmem:[#allocation2 + $0x70] sm:$0xff]
        %v424 = vld [vmem:[#allocation2 + $0x78] sm:$0xff]
        %v425 = vld [vmem:[#allocation2 + $0x80] sm:$0xff]
        %v426 = vld [vmem:[#allocation2 + $0x88] sm:$0xff]
        %v427 = vld [vmem:[#allocation2 + $0x90] sm:$0xff]
        %v428 = vld [vmem:[#allocation2 + $0x98] sm:$0xff]
        %v429 = vld [vmem:[#allocation2 + $0xa0] sm:$0xff]
        %v430 = vld [vmem:[#allocation2 + $0xa8] sm:$0xff]
        %v431 = vld [vmem:[#allocation2 + $0xb0] sm:$0xff]
        %v432 = vld [vmem:[#allocation2 + $0xb8] sm:$0xff]
        %v433 = vld [vmem:[#allocation2 + $0xc0] sm:$0xff]
        %v434 = vld [vmem:[#allocation2 + $0xc8] sm:$0xff]
        %v435 = vld [vmem:[#allocation2 + $0xd0] sm:$0xff]
        %v436 = vld [vmem:[#allocation2 + $0xd8] sm:$0xff]
        %v437 = vld [vmem:[#allocation2 + $0xe0] sm:$0xff]
        %v438 = vld [vmem:[#allocation2 + $0xe8] sm:$0xff]
        %v439 = vld [vmem:[#allocation2 + $0xf0] sm:$0xff]
        %v440 = vld [vmem:[#allocation2 + $0xf8] sm:$0xff]
        %v441 = vld [vmem:[%s332] sm:$0xff]
        %v442 = vld [vmem:[%s332 + $0x8] sm:$0xff]
        %v443 = vld [vmem:[%s332 + $0x10] sm:$0xff]
        %v444 = vld [vmem:[%s332 + $0x18] sm:$0xff]
        %v445 = vld [vmem:[%s332 + $0x20] sm:$0xff]
        %v446 = vld [vmem:[%s332 + $0x28] sm:$0xff]
        %v447 = vld [vmem:[%s332 + $0x30] sm:$0xff]
        %v448 = vld [vmem:[%s332 + $0x38] sm:$0xff]
        %v449 = vld [vmem:[%s332 + $0x40] sm:$0xff]
        %v450 = vld [vmem:[%s332 + $0x48] sm:$0xff]
        %v451 = vld [vmem:[%s332 + $0x50] sm:$0xff]
        %v452 = vld [vmem:[%s332 + $0x58] sm:$0xff]
        %v453 = vld [vmem:[%s332 + $0x60] sm:$0xff]
        %v454 = vld [vmem:[%s332 + $0x68] sm:$0xff]
        %v455 = vld [vmem:[%s332 + $0x70] sm:$0xff]
        %v456 = vld [vmem:[%s332 + $0x78] sm:$0xff]
        %v457 = vld [vmem:[%s332 + $0x80] sm:$0xff]
        %v458 = vld [vmem:[%s332 + $0x88] sm:$0xff]
        %v459 = vld [vmem:[%s332 + $0x90] sm:$0xff]
        %v460 = vld [vmem:[%s332 + $0x98] sm:$0xff]
        %v461 = vld [vmem:[%s332 + $0xa0] sm:$0xff]
        %v462 = vld [vmem:[%s332 + $0xa8] sm:$0xff]
        %v463 = vld [vmem:[%s332 + $0xb0] sm:$0xff]
        %v464 = vld [vmem:[%s332 + $0xb8] sm:$0xff]
        %v465 = vld [vmem:[%s332 + $0xc0] sm:$0xff]
        %v466 = vld [vmem:[%s332 + $0xc8] sm:$0xff]
        %v467 = vld [vmem:[%s332 + $0xd0] sm:$0xff]
        %v468 = vld [vmem:[%s332 + $0xd8] sm:$0xff]
        %v469 = vld [vmem:[%s332 + $0xe0] sm:$0xff]
        %v470 = vld [vmem:[%s332 + $0xe8] sm:$0xff]
        %v471 = vld [vmem:[%s332 + $0xf0] sm:$0xff]
        %v472 = vld [vmem:[%s332 + $0xf8] sm:$0xff]
        %v473 = vld [vmem:[%s364] sm:$0xf]
        %v474 = vld [vmem:[%s364 + $0x4] sm:$0xf]
        %v475 = vld [vmem:[%s364 + $0x8] sm:$0xf]
        %v476 = vld [vmem:[%s364 + $0xc] sm:$0xf]
        %v477 = vld [vmem:[%s364 + $0x10] sm:$0xf]
        %v478 = vld [vmem:[%s364 + $0x14] sm:$0xf]
        %v479 = vld [vmem:[%s364 + $0x18] sm:$0xf]
        %v480 = vld [vmem:[%s364 + $0x1c] sm:$0xf]
        %v481 = vld [vmem:[%s364 + $0x20] sm:$0xf]
        %v482 = vld [vmem:[%s364 + $0x24] sm:$0xf]
        %v483 = vld [vmem:[%s364 + $0x28] sm:$0xf]
        %v484 = vld [vmem:[%s364 + $0x2c] sm:$0xf]
        %v485 = vld [vmem:[%s364 + $0x30] sm:$0xf]
        %v486 = vld [vmem:[%s364 + $0x34] sm:$0xf]
        %v487 = vld [vmem:[%s364 + $0x38] sm:$0xf]
        %v488 = vld [vmem:[%s364 + $0x3c] sm:$0xf]
        %v489 = vld [vmem:[%s364 + $0x40] sm:$0xf]
        %v490 = vld [vmem:[%s364 + $0x44] sm:$0xf]
        %v491 = vld [vmem:[%s364 + $0x48] sm:$0xf]
        %v492 = vld [vmem:[%s364 + $0x4c] sm:$0xf]
        %v493 = vld [vmem:[%s364 + $0x50] sm:$0xf]
        %v494 = vld [vmem:[%s364 + $0x54] sm:$0xf]
        %v495 = vld [vmem:[%s364 + $0x58] sm:$0xf]
        %v496 = vld [vmem:[%s364 + $0x5c] sm:$0xf]
        %v497 = vld [vmem:[%s364 + $0x60] sm:$0xf]
        %v498 = vld [vmem:[%s364 + $0x64] sm:$0xf]
        %v499 = vld [vmem:[%s364 + $0x68] sm:$0xf]
        %v500 = vld [vmem:[%s364 + $0x6c] sm:$0xf]
        %v501 = vld [vmem:[%s364 + $0x70] sm:$0xf]
        %v502 = vld [vmem:[%s364 + $0x74] sm:$0xf]
        %v503 = vld [vmem:[%s364 + $0x78] sm:$0xf]
        %v504 = vld [vmem:[%s364 + $0x7c] sm:$0xf]
        %v537 = vunpack.c.l.b16 %v441
        %v538 = vunpack.c.h.b16 %v441
        %v539 = vunpack.c.l.b16 %v442
        %v540 = vunpack.c.h.b16 %v442
        %v541 = vunpack.c.l.b16 %v443
        %v542 = vunpack.c.h.b16 %v443
        %v543 = vunpack.c.l.b16 %v444
        %v544 = vunpack.c.h.b16 %v444
        %v545 = vunpack.c.l.b16 %v445
        %v546 = vunpack.c.h.b16 %v445
        %v547 = vunpack.c.l.b16 %v446
        %v548 = vunpack.c.h.b16 %v446
        %v549 = vunpack.c.l.b16 %v447
        %v550 = vunpack.c.h.b16 %v447
        %v551 = vunpack.c.l.b16 %v448
        %v552 = vunpack.c.h.b16 %v448
        %v553 = vunpack.c.l.b16 %v449
        %v554 = vunpack.c.h.b16 %v449
        %v555 = vunpack.c.l.b16 %v450
        %v556 = vunpack.c.h.b16 %v450
        %v557 = vunpack.c.l.b16 %v451
        %v558 = vunpack.c.h.b16 %v451
        %v559 = vunpack.c.l.b16 %v452
        %v560 = vunpack.c.h.b16 %v452
        %v561 = vunpack.c.l.b16 %v453
        %v562 = vunpack.c.h.b16 %v453
        %v563 = vunpack.c.l.b16 %v454
        %v564 = vunpack.c.h.b16 %v454
        %v565 = vunpack.c.l.b16 %v455
        %v566 = vunpack.c.h.b16 %v455
        %v567 = vunpack.c.l.b16 %v456
        %v568 = vunpack.c.h.b16 %v456
        %v569 = vunpack.c.l.b16 %v457
        %v570 = vunpack.c.h.b16 %v457
        %v571 = vunpack.c.l.b16 %v458
        %v572 = vunpack.c.h.b16 %v458
        %v573 = vunpack.c.l.b16 %v459
        %v574 = vunpack.c.h.b16 %v459
        %v575 = vunpack.c.l.b16 %v460
        %v576 = vunpack.c.h.b16 %v460
        %v577 = vunpack.c.l.b16 %v461
        %v578 = vunpack.c.h.b16 %v461
        %v579 = vunpack.c.l.b16 %v462
        %v580 = vunpack.c.h.b16 %v462
        %v581 = vunpack.c.l.b16 %v463
        %v582 = vunpack.c.h.b16 %v463
        %v583 = vunpack.c.l.b16 %v464
        %v584 = vunpack.c.h.b16 %v464
        %v585 = vunpack.c.l.b16 %v465
        %v586 = vunpack.c.h.b16 %v465
        %v587 = vunpack.c.l.b16 %v466
        %v588 = vunpack.c.h.b16 %v466
        %v589 = vunpack.c.l.b16 %v467
        %v590 = vunpack.c.h.b16 %v467
        %v591 = vunpack.c.l.b16 %v468
        %v592 = vunpack.c.h.b16 %v468
        %v593 = vunpack.c.l.b16 %v469
        %v594 = vunpack.c.h.b16 %v469
        %v595 = vunpack.c.l.b16 %v470
        %v596 = vunpack.c.h.b16 %v470
        %v597 = vunpack.c.l.b16 %v471
        %v598 = vunpack.c.h.b16 %v471
        %v599 = vunpack.c.l.b16 %v472
        %v600 = vunpack.c.h.b16 %v472
        %v601 = vpack.c.b16 %v539, %v537
        %v602 = vpack.c.b16 %v540, %v538
        %v603 = vpack.c.b16 %v543, %v541
        %v604 = vpack.c.b16 %v544, %v542
        %v605 = vpack.c.b16 %v547, %v545
        %v606 = vpack.c.b16 %v548, %v546
        %v607 = vpack.c.b16 %v551, %v549
        %v608 = vpack.c.b16 %v552, %v550
        %v609 = vpack.c.b16 %v555, %v553
        %v610 = vpack.c.b16 %v556, %v554
        %v611 = vpack.c.b16 %v559, %v557
        %v612 = vpack.c.b16 %v560, %v558
        %v613 = vpack.c.b16 %v563, %v561
        %v614 = vpack.c.b16 %v564, %v562
        %v615 = vpack.c.b16 %v567, %v565
        %v616 = vpack.c.b16 %v568, %v566
        %v617 = vpack.c.b16 %v571, %v569
        %v618 = vpack.c.b16 %v572, %v570
        %v619 = vpack.c.b16 %v575, %v573
        %v620 = vpack.c.b16 %v576, %v574
        %v621 = vpack.c.b16 %v579, %v577
        %v622 = vpack.c.b16 %v580, %v578
        %v623 = vpack.c.b16 %v583, %v581
        %v624 = vpack.c.b16 %v584, %v582
        %v625 = vpack.c.b16 %v587, %v585
        %v626 = vpack.c.b16 %v588, %v586
        %v627 = vpack.c.b16 %v591, %v589
        %v628 = vpack.c.b16 %v592, %v590
        %v629 = vpack.c.b16 %v595, %v593
        %v630 = vpack.c.b16 %v596, %v594
        %v631 = vpack.c.b16 %v599, %v597
        %v632 = vpack.c.b16 %v600, %v598
        %v697 = vunpack.c.l.b16 %v473
        %v698 = vunpack.c.l.b16 %v474
        %v699 = vunpack.c.l.b16 %v475
        %v700 = vunpack.c.l.b16 %v476
        %v701 = vunpack.c.l.b16 %v477
        %v702 = vunpack.c.l.b16 %v478
        %v703 = vunpack.c.l.b16 %v479
        %v704 = vunpack.c.l.b16 %v480
        %v705 = vunpack.c.l.b16 %v481
        %v706 = vunpack.c.l.b16 %v482
        %v707 = vunpack.c.l.b16 %v483
        %v708 = vunpack.c.l.b16 %v484
        %v709 = vunpack.c.l.b16 %v485
        %v710 = vunpack.c.l.b16 %v486
        %v711 = vunpack.c.l.b16 %v487
        %v712 = vunpack.c.l.b16 %v488
        %v713 = vunpack.c.l.b16 %v489
        %v714 = vunpack.c.l.b16 %v490
        %v715 = vunpack.c.l.b16 %v491
        %v716 = vunpack.c.l.b16 %v492
        %v717 = vunpack.c.l.b16 %v493
        %v718 = vunpack.c.l.b16 %v494
        %v719 = vunpack.c.l.b16 %v495
        %v720 = vunpack.c.l.b16 %v496
        %v721 = vunpack.c.l.b16 %v497
        %v722 = vunpack.c.l.b16 %v498
        %v723 = vunpack.c.l.b16 %v499
        %v724 = vunpack.c.l.b16 %v500
        %v725 = vunpack.c.l.b16 %v501
        %v726 = vunpack.c.l.b16 %v502
        %v727 = vunpack.c.l.b16 %v503
        %v728 = vunpack.c.l.b16 %v504
        %v729 = vpack.c.b16 %v698, %v697
        %v730 = vpack.c.b16 %v700, %v699
        %v731 = vpack.c.b16 %v702, %v701
        %v732 = vpack.c.b16 %v704, %v703
        %v733 = vpack.c.b16 %v706, %v705
        %v734 = vpack.c.b16 %v708, %v707
        %v735 = vpack.c.b16 %v710, %v709
        %v736 = vpack.c.b16 %v712, %v711
        %v737 = vpack.c.b16 %v714, %v713
        %v738 = vpack.c.b16 %v716, %v715
        %v739 = vpack.c.b16 %v718, %v717
        %v740 = vpack.c.b16 %v720, %v719
        %v741 = vpack.c.b16 %v722, %v721
        %v742 = vpack.c.b16 %v724, %v723
        %v743 = vpack.c.b16 %v726, %v725
        %v744 = vpack.c.b16 %v728, %v727
        %761 = vmatprep.subr.bf16.mxu0 0
        %762 = vmatpush1.bf16.msra.mxu0 %v729
        %763 = vmatprep.subr.bf16.mxu0 0
        %764 = vmatpush1.bf16.msra.mxu0 %v730
        %765 = vmatprep.subr.bf16.mxu0 0
        %766 = vmatpush1.bf16.msra.mxu0 %v731
        %767 = vmatprep.subr.bf16.mxu0 0
        %768 = vmatpush1.bf16.msra.mxu0 %v732
        %769 = vmatprep.subr.bf16.mxu0 0
        %770 = vmatpush1.bf16.msra.mxu0 %v733
        %771 = vmatprep.subr.bf16.mxu0 0
        %772 = vmatpush1.bf16.msra.mxu0 %v734
        %773 = vmatprep.subr.bf16.mxu0 0
        %774 = vmatpush1.bf16.msra.mxu0 %v735
        %775 = vmatprep.subr.bf16.mxu0 0
        %776 = vmatpush1.bf16.msra.mxu0 %v736
        %777 = vmatprep.subr.bf16.mxu0 0
        %778 = vmatpush1.bf16.msra.mxu0 %v737
        %779 = vmatprep.subr.bf16.mxu0 0
        %780 = vmatpush1.bf16.msra.mxu0 %v738
        %781 = vmatprep.subr.bf16.mxu0 0
        %782 = vmatpush1.bf16.msra.mxu0 %v739
        %783 = vmatprep.subr.bf16.mxu0 0
        %784 = vmatpush1.bf16.msra.mxu0 %v740
        %785 = vmatprep.subr.bf16.mxu0 0
        %786 = vmatpush1.bf16.msra.mxu0 %v741
        %787 = vmatprep.subr.bf16.mxu0 0
        %788 = vmatpush1.bf16.msra.mxu0 %v742
        %789 = vmatprep.subr.bf16.mxu0 0
        %790 = vmatpush1.bf16.msra.mxu0 %v743
        %791 = vmatprep.subr.bf16.mxu0 0
        %792 = vmatpush1.bf16.msra.mxu0 %v744
        %793 = vmatprep.mubr.bf16.mxu0 %v602
        %794 = vmatmul.mubr.bf16.gmra.mrb[0].mxu0 %v601
        %v795 = vpop.f32.mrb[0].mxu0
        %v796 = vadd.f32 0.0, %v795
        %v797 = vpop.f32.mrb[0].mxu0
        %v798 = vpop.f32.mrb[0].mxu0
        %v799 = vadd.f32 0.0, %v798
        %v800 = vpop.f32.mrb[0].mxu0
        %801 = vmatprep.mubr.bf16.mxu0 %v604
        %802 = vmatmul.mubr.bf16.gmra.mrb[0].mxu0 %v603
        %v803 = vpop.f32.mrb[0].mxu0
        %v804 = vadd.f32 0.0, %v803
        %v805 = vpop.f32.mrb[0].mxu0
        %v806 = vpop.f32.mrb[0].mxu0
        %v807 = vadd.f32 0.0, %v806
        %v808 = vpop.f32.mrb[0].mxu0
        %809 = vmatprep.mubr.bf16.mxu0 %v606
        %810 = vmatmul.mubr.bf16.gmra.mrb[0].mxu0 %v605
        %v811 = vpop.f32.mrb[0].mxu0
        %v812 = vadd.f32 0.0, %v811
        %v813 = vpop.f32.mrb[0].mxu0
        %v814 = vpop.f32.mrb[0].mxu0
        %v815 = vadd.f32 0.0, %v814
        %v816 = vpop.f32.mrb[0].mxu0
        %817 = vmatprep.mubr.bf16.mxu0 %v608
        %818 = vmatmul.mubr.bf16.gmra.mrb[0].mxu0 %v607
        %v819 = vpop.f32.mrb[0].mxu0
        %v820 = vadd.f32 0.0, %v819
        %v821 = vpop.f32.mrb[0].mxu0
        %v822 = vpop.f32.mrb[0].mxu0
        %v823 = vadd.f32 0.0, %v822
        %v824 = vpop.f32.mrb[0].mxu0
        %825 = vmatprep.mubr.bf16.mxu0 %v610
        %826 = vmatmul.mubr.bf16.gmra.mrb[0].mxu0 %v609
        %v827 = vpop.f32.mrb[0].mxu0
        %v828 = vadd.f32 0.0, %v827
        %v829 = vpop.f32.mrb[0].mxu0
        %v830 = vpop.f32.mrb[0].mxu0
        %v831 = vadd.f32 0.0, %v830
        %v832 = vpop.f32.mrb[0].mxu0
        %833 = vmatprep.mubr.bf16.mxu0 %v612
        %834 = vmatmul.mubr.bf16.gmra.mrb[0].mxu0 %v611
        %v835 = vpop.f32.mrb[0].mxu0
        %v836 = vadd.f32 0.0, %v835
        %v837 = vpop.f32.mrb[0].mxu0
        %v838 = vpop.f32.mrb[0].mxu0
        %v839 = vadd.f32 0.0, %v838
        %v840 = vpop.f32.mrb[0].mxu0
        %841 = vmatprep.mubr.bf16.mxu0 %v614
        %842 = vmatmul.mubr.bf16.gmra.mrb[0].mxu0 %v613
        %v843 = vpop.f32.mrb[0].mxu0
        %v844 = vadd.f32 0.0, %v843
        %v845 = vpop.f32.mrb[0].mxu0
        %v846 = vpop.f32.mrb[0].mxu0
        %v847 = vadd.f32 0.0, %v846
        %v848 = vpop.f32.mrb[0].mxu0
        %849 = vmatprep.mubr.bf16.mxu0 %v616
        %850 = vmatmul.mubr.bf16.gmra.mrb[0].mxu0 %v615
        %v851 = vpop.f32.mrb[0].mxu0
        %v852 = vadd.f32 0.0, %v851
        %v853 = vpop.f32.mrb[0].mxu0
        %v854 = vpop.f32.mrb[0].mxu0
        %v855 = vadd.f32 0.0, %v854
        %v856 = vpop.f32.mrb[0].mxu0
        %857 = vmatprep.mubr.bf16.mxu0 %v618
        %858 = vmatmul.mubr.bf16.gmra.mrb[0].mxu0 %v617
        %v859 = vpop.f32.mrb[0].mxu0
        %v860 = vadd.f32 0.0, %v859
        %v861 = vpop.f32.mrb[0].mxu0
        %v862 = vpop.f32.mrb[0].mxu0
        %v863 = vadd.f32 0.0, %v862
        %v864 = vpop.f32.mrb[0].mxu0
        %865 = vmatprep.mubr.bf16.mxu0 %v620
        %866 = vmatmul.mubr.bf16.gmra.mrb[0].mxu0 %v619
        %v867 = vpop.f32.mrb[0].mxu0
        %v868 = vadd.f32 0.0, %v867
        %v869 = vpop.f32.mrb[0].mxu0
        %v870 = vpop.f32.mrb[0].mxu0
        %v871 = vadd.f32 0.0, %v870
        %v872 = vpop.f32.mrb[0].mxu0
        %873 = vmatprep.mubr.bf16.mxu0 %v622
        %874 = vmatmul.mubr.bf16.gmra.mrb[0].mxu0 %v621
        %v875 = vpop.f32.mrb[0].mxu0
        %v876 = vadd.f32 0.0, %v875
        %v877 = vpop.f32.mrb[0].mxu0
        %v878 = vpop.f32.mrb[0].mxu0
        %v879 = vadd.f32 0.0, %v878
        %v880 = vpop.f32.mrb[0].mxu0
        %881 = vmatprep.mubr.bf16.mxu0 %v624
        %882 = vmatmul.mubr.bf16.gmra.mrb[0].mxu0 %v623
        %v883 = vpop.f32.mrb[0].mxu0
        %v884 = vadd.f32 0.0, %v883
        %v885 = vpop.f32.mrb[0].mxu0
        %v886 = vpop.f32.mrb[0].mxu0
        %v887 = vadd.f32 0.0, %v886
        %v888 = vpop.f32.mrb[0].mxu0
        %889 = vmatprep.mubr.bf16.mxu0 %v626
        %890 = vmatmul.mubr.bf16.gmra.mrb[0].mxu0 %v625
        %v891 = vpop.f32.mrb[0].mxu0
        %v892 = vadd.f32 0.0, %v891
        %v893 = vpop.f32.mrb[0].mxu0
        %v894 = vpop.f32.mrb[0].mxu0
        %v895 = vadd.f32 0.0, %v894
        %v896 = vpop.f32.mrb[0].mxu0
        %897 = vmatprep.mubr.bf16.mxu0 %v628
        %898 = vmatmul.mubr.bf16.gmra.mrb[0].mxu0 %v627
        %v899 = vpop.f32.mrb[0].mxu0
        %v900 = vadd.f32 0.0, %v899
        %v901 = vpop.f32.mrb[0].mxu0
        %v902 = vpop.f32.mrb[0].mxu0
        %v903 = vadd.f32 0.0, %v902
        %v904 = vpop.f32.mrb[0].mxu0
        %905 = vmatprep.mubr.bf16.mxu0 %v630
        %906 = vmatmul.mubr.bf16.gmra.mrb[0].mxu0 %v629
        %v907 = vpop.f32.mrb[0].mxu0
        %v908 = vadd.f32 0.0, %v907
        %v909 = vpop.f32.mrb[0].mxu0
        %v910 = vpop.f32.mrb[0].mxu0
        %v911 = vadd.f32 0.0, %v910
        %v912 = vpop.f32.mrb[0].mxu0
        %913 = vmatprep.mubr.bf16.mxu0 %v632
        %914 = vmatmul.mubr.bf16.gmra.mrb[0].mxu0 %v631
        %v915 = vpop.f32.mrb[0].mxu0
        %v916 = vadd.f32 0.0, %v915
        %v917 = vpop.f32.mrb[0].mxu0
        %v918 = vpop.f32.mrb[0].mxu0
        %v919 = vadd.f32 0.0, %v918
        %v920 = vpop.f32.mrb[0].mxu0
        %921 = vdwg.mxu0
        %v922 = vadd.f32 %v409, %v796
        %v923 = vadd.f32 %v410, %v799
        %v924 = vadd.f32 %v411, %v804
        %v925 = vadd.f32 %v412, %v807
        %v926 = vadd.f32 %v413, %v812
        %v927 = vadd.f32 %v414, %v815
        %v928 = vadd.f32 %v415, %v820
        %v929 = vadd.f32 %v416, %v823
        %v930 = vadd.f32 %v417, %v828
        %v931 = vadd.f32 %v418, %v831
        %v932 = vadd.f32 %v419, %v836
        %v933 = vadd.f32 %v420, %v839
        %v934 = vadd.f32 %v421, %v844
        %v935 = vadd.f32 %v422, %v847
        %v936 = vadd.f32 %v423, %v852
        %v937 = vadd.f32 %v424, %v855
        %v938 = vadd.f32 %v425, %v860
        %v939 = vadd.f32 %v426, %v863
        %v940 = vadd.f32 %v427, %v868
        %v941 = vadd.f32 %v428, %v871
        %v942 = vadd.f32 %v429, %v876
        %v943 = vadd.f32 %v430, %v879
        %v944 = vadd.f32 %v431, %v884
        %v945 = vadd.f32 %v432, %v887
        %v946 = vadd.f32 %v433, %v892
        %v947 = vadd.f32 %v434, %v895
        %v948 = vadd.f32 %v435, %v900
        %v949 = vadd.f32 %v436, %v903
        %v950 = vadd.f32 %v437, %v908
        %v951 = vadd.f32 %v438, %v911
        %v952 = vadd.f32 %v439, %v916
        %v953 = vadd.f32 %v440, %v919
        %954 = vst [vmem:[#allocation2] sm:$0xff] %v922
        %955 = vst [vmem:[#allocation2 + $0x8] sm:$0xff] %v923
        %956 = vst [vmem:[#allocation2 + $0x10] sm:$0xff] %v924
        %957 = vst [vmem:[#allocation2 + $0x18] sm:$0xff] %v925
        %958 = vst [vmem:[#allocation2 + $0x20] sm:$0xff] %v926
        %959 = vst [vmem:[#allocation2 + $0x28] sm:$0xff] %v927
        %960 = vst [vmem:[#allocation2 + $0x30] sm:$0xff] %v928
        %961 = vst [vmem:[#allocation2 + $0x38] sm:$0xff] %v929
        %962 = vst [vmem:[#allocation2 + $0x40] sm:$0xff] %v930
        %963 = vst [vmem:[#allocation2 + $0x48] sm:$0xff] %v931
        %964 = vst [vmem:[#allocation2 + $0x50] sm:$0xff] %v932
        %965 = vst [vmem:[#allocation2 + $0x58] sm:$0xff] %v933
        %966 = vst [vmem:[#allocation2 + $0x60] sm:$0xff] %v934
        %967 = vst [vmem:[#allocation2 + $0x68] sm:$0xff] %v935
        %968 = vst [vmem:[#allocation2 + $0x70] sm:$0xff] %v936
        %969 = vst [vmem:[#allocation2 + $0x78] sm:$0xff] %v937
        %970 = vst [vmem:[#allocation2 + $0x80] sm:$0xff] %v938
        %971 = vst [vmem:[#allocation2 + $0x88] sm:$0xff] %v939
        %972 = vst [vmem:[#allocation2 + $0x90] sm:$0xff] %v940
        %973 = vst [vmem:[#allocation2 + $0x98] sm:$0xff] %v941
        %974 = vst [vmem:[#allocation2 + $0xa0] sm:$0xff] %v942
        %975 = vst [vmem:[#allocation2 + $0xa8] sm:$0xff] %v943
        %976 = vst [vmem:[#allocation2 + $0xb0] sm:$0xff] %v944
        %977 = vst [vmem:[#allocation2 + $0xb8] sm:$0xff] %v945
        %978 = vst [vmem:[#allocation2 + $0xc0] sm:$0xff] %v946
        %979 = vst [vmem:[#allocation2 + $0xc8] sm:$0xff] %v947
        %980 = vst [vmem:[#allocation2 + $0xd0] sm:$0xff] %v948
        %981 = vst [vmem:[#allocation2 + $0xd8] sm:$0xff] %v949
        %982 = vst [vmem:[#allocation2 + $0xe0] sm:$0xff] %v950
        %983 = vst [vmem:[#allocation2 + $0xe8] sm:$0xff] %v951
        %984 = vst [vmem:[#allocation2 + $0xf0] sm:$0xff] %v952
        %985 = vst [vmem:[#allocation2 + $0xf8] sm:$0xff] %v953
        %p986 = scmp.eq.s32.totalorder %s19, 1
        // Predicated region
        $region75: #{encoder_forward.5} parent=65 // pred_check
          %p987 = pneg %p986
        $region76: #{encoder_forward.5} parent=65 // pred_check_branch
          %989 = sbr.rel (%p987) target = $region78
        $region77: #{encoder_forward.5} parent=65 // pred_region
          %v990 = vld [vmem:[#allocation2] sm:$0xff]
          %v991 = vld [vmem:[#allocation2 + $0x8] sm:$0xff]
          %v992 = vld [vmem:[#allocation2 + $0x10] sm:$0xff]
          %v993 = vld [vmem:[#allocation2 + $0x18] sm:$0xff]
          %v994 = vld [vmem:[#allocation2 + $0x20] sm:$0xff]
          %v995 = vld [vmem:[#allocation2 + $0x28] sm:$0xff]
          %v996 = vld [vmem:[#allocation2 + $0x30] sm:$0xff]
          %v997 = vld [vmem:[#allocation2 + $0x38] sm:$0xff]
          %v998 = vld [vmem:[#allocation2 + $0x40] sm:$0xff]
          %v999 = vld [vmem:[#allocation2 + $0x48] sm:$0xff]
          %v1000 = vld [vmem:[#allocation2 + $0x50] sm:$0xff]
          %v1001 = vld [vmem:[#allocation2 + $0x58] sm:$0xff]
          %v1002 = vld [vmem:[#allocation2 + $0x60] sm:$0xff]
          %v1003 = vld [vmem:[#allocation2 + $0x68] sm:$0xff]
          %v1004 = vld [vmem:[#allocation2 + $0x70] sm:$0xff]
          %v1005 = vld [vmem:[#allocation2 + $0x78] sm:$0xff]
          %v1006 = vld [vmem:[#allocation2 + $0x80] sm:$0xff]
          %v1007 = vld [vmem:[#allocation2 + $0x88] sm:$0xff]
          %v1008 = vld [vmem:[#allocation2 + $0x90] sm:$0xff]
          %v1009 = vld [vmem:[#allocation2 + $0x98] sm:$0xff]
          %v1010 = vld [vmem:[#allocation2 + $0xa0] sm:$0xff]
          %v1011 = vld [vmem:[#allocation2 + $0xa8] sm:$0xff]
          %v1012 = vld [vmem:[#allocation2 + $0xb0] sm:$0xff]
          %v1013 = vld [vmem:[#allocation2 + $0xb8] sm:$0xff]
          %v1014 = vld [vmem:[#allocation2 + $0xc0] sm:$0xff]
          %v1015 = vld [vmem:[#allocation2 + $0xc8] sm:$0xff]
          %v1016 = vld [vmem:[#allocation2 + $0xd0] sm:$0xff]
          %v1017 = vld [vmem:[#allocation2 + $0xd8] sm:$0xff]
          %v1018 = vld [vmem:[#allocation2 + $0xe0] sm:$0xff]
          %v1019 = vld [vmem:[#allocation2 + $0xe8] sm:$0xff]
          %v1020 = vld [vmem:[#allocation2 + $0xf0] sm:$0xff]
          %v1021 = vld [vmem:[#allocation2 + $0xf8] sm:$0xff]
          %v1022 = vld [vmem:[%s2] sm:$0x1]
          %v1024 = vlaneseq
          %v1025 = vshrl.u32 %v1024, 7
          %v1026 = vsub.s32 0, %v1025
          %v1027 = vrot.slane %v1022, %v1026
          %v1029 = vadd.f32 %v990, %v1027
          %v1030 = vadd.f32 %v991, %v1027
          %v1031 = vadd.f32 %v992, %v1027
          %v1032 = vadd.f32 %v993, %v1027
          %v1033 = vadd.f32 %v994, %v1027
          %v1034 = vadd.f32 %v995, %v1027
          %v1035 = vadd.f32 %v996, %v1027
          %v1036 = vadd.f32 %v997, %v1027
          %v1037 = vadd.f32 %v998, %v1027
          %v1038 = vadd.f32 %v999, %v1027
          %v1039 = vadd.f32 %v1000, %v1027
          %v1040 = vadd.f32 %v1001, %v1027
          %v1041 = vadd.f32 %v1002, %v1027
          %v1042 = vadd.f32 %v1003, %v1027
          %v1043 = vadd.f32 %v1004, %v1027
          %v1044 = vadd.f32 %v1005, %v1027
          %v1045 = vadd.f32 %v1006, %v1027
          %v1046 = vadd.f32 %v1007, %v1027
          %v1047 = vadd.f32 %v1008, %v1027
          %v1048 = vadd.f32 %v1009, %v1027
          %v1049 = vadd.f32 %v1010, %v1027
          %v1050 = vadd.f32 %v1011, %v1027
          %v1051 = vadd.f32 %v1012, %v1027
          %v1052 = vadd.f32 %v1013, %v1027
          %v1053 = vadd.f32 %v1014, %v1027
          %v1054 = vadd.f32 %v1015, %v1027
          %v1055 = vadd.f32 %v1016, %v1027
          %v1056 = vadd.f32 %v1017, %v1027
          %v1057 = vadd.f32 %v1018, %v1027
          %v1058 = vadd.f32 %v1019, %v1027
          %v1059 = vadd.f32 %v1020, %v1027
          %v1060 = vadd.f32 %v1021, %v1027
          %v1061 = vmax.f32 %v1029, 0.0
          %v1062 = vmax.f32 %v1030, 0.0
          %v1063 = vmax.f32 %v1031, 0.0
          %v1064 = vmax.f32 %v1032, 0.0
          %v1065 = vmax.f32 %v1033, 0.0
          %v1066 = vmax.f32 %v1034, 0.0
          %v1067 = vmax.f32 %v1035, 0.0
          %v1068 = vmax.f32 %v1036, 0.0
          %v1069 = vmax.f32 %v1037, 0.0
          %v1070 = vmax.f32 %v1038, 0.0
          %v1071 = vmax.f32 %v1039, 0.0
          %v1072 = vmax.f32 %v1040, 0.0
          %v1073 = vmax.f32 %v1041, 0.0
          %v1074 = vmax.f32 %v1042, 0.0
          %v1075 = vmax.f32 %v1043, 0.0
          %v1076 = vmax.f32 %v1044, 0.0
          %v1077 = vmax.f32 %v1045, 0.0
          %v1078 = vmax.f32 %v1046, 0.0
          %v1079 = vmax.f32 %v1047, 0.0
          %v1080 = vmax.f32 %v1048, 0.0
          %v1081 = vmax.f32 %v1049, 0.0
          %v1082 = vmax.f32 %v1050, 0.0
          %v1083 = vmax.f32 %v1051, 0.0
          %v1084 = vmax.f32 %v1052, 0.0
          %v1085 = vmax.f32 %v1053, 0.0
          %v1086 = vmax.f32 %v1054, 0.0
          %v1087 = vmax.f32 %v1055, 0.0
          %v1088 = vmax.f32 %v1056, 0.0
          %v1089 = vmax.f32 %v1057, 0.0
          %v1090 = vmax.f32 %v1058, 0.0
          %v1091 = vmax.f32 %v1059, 0.0
          %v1092 = vmax.f32 %v1060, 0.0
          %1093 = vst [vmem:[%s370] sm:$0xff] %v1061
          %1094 = vst [vmem:[%s370 + $0x8] sm:$0xff] %v1062
          %1095 = vst [vmem:[%s370 + $0x10] sm:$0xff] %v1063
          %1096 = vst [vmem:[%s370 + $0x18] sm:$0xff] %v1064
          %1097 = vst [vmem:[%s370 + $0x20] sm:$0xff] %v1065
          %1098 = vst [vmem:[%s370 + $0x28] sm:$0xff] %v1066
          %1099 = vst [vmem:[%s370 + $0x30] sm:$0xff] %v1067
          %1100 = vst [vmem:[%s370 + $0x38] sm:$0xff] %v1068
          %1101 = vst [vmem:[%s370 + $0x40] sm:$0xff] %v1069
          %1102 = vst [vmem:[%s370 + $0x48] sm:$0xff] %v1070
          %1103 = vst [vmem:[%s370 + $0x50] sm:$0xff] %v1071
          %1104 = vst [vmem:[%s370 + $0x58] sm:$0xff] %v1072
          %1105 = vst [vmem:[%s370 + $0x60] sm:$0xff] %v1073
          %1106 = vst [vmem:[%s370 + $0x68] sm:$0xff] %v1074
          %1107 = vst [vmem:[%s370 + $0x70] sm:$0xff] %v1075
          %1108 = vst [vmem:[%s370 + $0x78] sm:$0xff] %v1076
          %1109 = vst [vmem:[%s370 + $0x80] sm:$0xff] %v1077
          %1110 = vst [vmem:[%s370 + $0x88] sm:$0xff] %v1078
          %1111 = vst [vmem:[%s370 + $0x90] sm:$0xff] %v1079
          %1112 = vst [vmem:[%s370 + $0x98] sm:$0xff] %v1080
          %1113 = vst [vmem:[%s370 + $0xa0] sm:$0xff] %v1081
          %1114 = vst [vmem:[%s370 + $0xa8] sm:$0xff] %v1082
          %1115 = vst [vmem:[%s370 + $0xb0] sm:$0xff] %v1083
          %1116 = vst [vmem:[%s370 + $0xb8] sm:$0xff] %v1084
          %1117 = vst [vmem:[%s370 + $0xc0] sm:$0xff] %v1085
          %1118 = vst [vmem:[%s370 + $0xc8] sm:$0xff] %v1086
          %1119 = vst [vmem:[%s370 + $0xd0] sm:$0xff] %v1087
          %1120 = vst [vmem:[%s370 + $0xd8] sm:$0xff] %v1088
          %1121 = vst [vmem:[%s370 + $0xe0] sm:$0xff] %v1089
          %1122 = vst [vmem:[%s370 + $0xe8] sm:$0xff] %v1090
          %1123 = vst [vmem:[%s370 + $0xf0] sm:$0xff] %v1091
          %1124 = vst [vmem:[%s370 + $0xf8] sm:$0xff] %v1092
        $region78: #{encoder_forward.5} parent=65 // pred_fallthru
          _
        %s1125 = smul.u32 32, %s18
        %p1126 = scmp.lt.s32.totalorder %s1125, 63
        %s1127 = scalar_select %p1126, %s1125, 63
        %s1128 = smul.addr %s1127, 8
        %s1129 = scalar_lea.vmem %s3, %s1128
        // Predicated region
        $region79: #{encoder_forward.5} parent=65 // pred_check
          %p1130 = pneg %p119
        $region80: #{encoder_forward.5} parent=65 // pred_check_branch
          %1132 = sbr.rel (%p1130) target = $region82
        $region81: #{encoder_forward.5} parent=65 // pred_region
          %s1133 = smul.u32 32, %s18
        $region82: #{encoder_forward.5} parent=65 // pred_fallthru
          _
      $region66: #{encoder_forward.5} parent=5 // pred_fallthru
        _
      %p1134 = scmp.le.s32.totalorder 2, %s9
      // Predicated region
      $region83: #{encoder_forward.5} parent=5 // pred_check
        %p1135 = pneg %p1134
      $region84: #{encoder_forward.5} parent=5 // pred_check_branch
        %1137 = sbr.rel (%p1135) target = $region86
      $region85: #{encoder_forward.5} parent=5 // pred_region
        %s1138 = ssub.s32 %s9, 2
        // Predicated region
        $region87: #{encoder_forward.5} parent=85 // pred_check
          %p1139 = pneg %p125
        $region88: #{encoder_forward.5} parent=85 // pred_check_branch
          %1141 = sbr.rel (%p1139) target = $region90
        $region89: #{encoder_forward.5} parent=85 // pred_region
          %s1142 = smul.u32 32, %s20
          %p1143 = scmp.lt.s32.totalorder %s1142, 63
          %s1144 = scalar_select %p1143, %s1142, 63
          %s1145 = smul.addr %s1144, 8
          %s1146 = scalar_lea.vmem %s3, %s1145
        $region90: #{encoder_forward.5} parent=85 // pred_fallthru
          _
      $region86: #{encoder_forward.5} parent=5 // pred_fallthru
        _
    $region6: #{encoder_forward.5} parent=1 // loop_footer
      %s13 = sadd.s32 1, %s9
    $region7: #{encoder_forward.5} parent=1 // loop_footer_branch
      %8 = sbr.rel target = $region3
    $region8: #{encoder_forward.5} parent=1 // loop_exit
      _

</llo_original>
